<compile_context>
chip_gen: v6e
topology: v6e:2x2x1
jax: 0.10.0
libtpu: 0.0.40
codegen_flags: <defaults>
</compile_context>

<pallas_src>
import functools
from typing import NamedTuple

import jax
import jax.numpy as jnp
from jax import lax
from jax.experimental import pallas as pl
from jax.experimental.pallas import tpu as pltpu


def _round_up(x: int, m: int) -> int:
    return ((x + m - 1) // m) * m


def _pick_head_group(num_heads: int, head_dim: int, target_width: int) -> int:
    """Smallest divisor g of num_heads with g*head_dim >= target_width, else all heads."""
    for g in range(1, num_heads + 1):
        if num_heads % g == 0 and g * head_dim >= target_width:
            return g
    return num_heads


class PackedMSAParams(NamedTuple):
    wqkv: jax.Array      # (num_groups, C_pad, 3*G*hd) compute dtype; scale folded into Q cols
    wo: jax.Array        # (num_groups, G, hd, C_pad)  compute dtype
    bias: jax.Array      # (1, C_pad) float32
    num_heads: int
    group_size: int      # G heads processed per grid step
    head_dim: int
    dim: int
    dim_padded: int


def pack_msa_params(wq, wk, wv, w_proj, b_proj, num_heads,
                    compute_dtype=jnp.bfloat16, target_mxu_width=256):
    """One-time weight layout prep (hoisted out of the per-call path).

    target_mxu_width: 256 for v6e/v7x MXU columns; use 128 on v5e.
    """
    C = wq.shape[0]
    assert C % num_heads == 0
    hd = C // num_heads
    G = _pick_head_group(num_heads, hd, target_mxu_width)
    ng = num_heads // G
    ghd = G * hd
    C_pad = _round_up(C, 128)             # lane-dense last dim for x / out blocks
    scale = float(hd) ** -0.5

    def grp_cols(w):                      # (C, C) -> (ng, C, G*hd), columns grouped by head
        return w.reshape(C, ng, ghd).transpose(1, 0, 2)

    # Fused QKV weights per group; fold the softmax scale into the Q columns (f32, then cast).
    wqkv = jnp.concatenate(
        [grp_cols(wq) * scale, grp_cols(wk), grp_cols(wv)], axis=-1)   # (ng, C, 3*G*hd)
    wqkv = jnp.pad(wqkv, ((0, 0), (0, C_pad - C), (0, 0))).astype(compute_dtype)

    # Output projection rows grouped by (group, head-in-group); pad output channels.
    wo = w_proj.reshape(ng, G, hd, C)
    wo = jnp.pad(wo, ((0, 0), (0, 0), (0, 0), (0, C_pad - C))).astype(compute_dtype)

    bias = jnp.pad(b_proj, (0, C_pad - C)).reshape(1, C_pad).astype(jnp.float32)

    return PackedMSAParams(wqkv=wqkv, wo=wo, bias=bias, num_heads=num_heads,
                           group_size=G, head_dim=hd, dim=C, dim_padded=C_pad)


def _msa_kernel(x_ref, wqkv_ref, wo_ref, bo_ref, out_ref, *, group_heads, head_dim):
    # x_ref   : (1, N, C_pad)            compute dtype, resident across head-group steps
    # wqkv_ref: (ng, C_pad, 3*G*hd)      grid-resident (constant index_map), fetched once
    # wo_ref  : (ng, G, hd, C_pad)       grid-resident
    # bo_ref  : (1, C_pad)               f32 projection bias (padded)
    # out_ref : (1, N, C_pad) f32        resident output block == accumulator over groups
    g = pl.program_id(1)
    ghd = group_heads * head_dim
    cdt = x_ref.dtype                       # MXU operand dtype (bf16 by default)

    x = x_ref[0]                            # (N, C_pad)
    wqkv = wqkv_ref[g]                      # (C_pad, 3*G*hd)

    # Fused, head-grouped QKV projection: one wide MXU matmul, f32 accumulation.
    # (softmax scale already folded into the Q columns at pack time)
    qkv = jnp.dot(x, wqkv, preferred_element_type=jnp.float32)      # (N, 3*G*hd) f32

    contrib = None
    for i in range(group_heads):            # static unroll over the heads of this group
        lo = i * head_dim
        hi = lo + head_dim
        q_i = qkv[:, lo:hi].astype(cdt)                             # (N, hd)
        k_i = qkv[:, ghd + lo:ghd + hi].astype(cdt)
        v_i = qkv[:, 2 * ghd + lo:2 * ghd + hi].astype(cdt)

        # s = q k^T (scale pre-folded); softmax stats stay in f32.
        s = lax.dot_general(q_i, k_i, (((1,), (1,)), ((), ())),
                            preferred_element_type=jnp.float32)     # (N, N) f32
        m = jnp.max(s, axis=-1, keepdims=True)
        p = jnp.exp(s - m)                                          # unnormalized probs
        l = jnp.sum(p, axis=-1, keepdims=True)

        # Deferred normalization: matmul with unnormalized p, then one EUP reciprocal.
        ctx = jnp.dot(p.astype(cdt), v_i,
                      preferred_element_type=jnp.float32)           # (N, hd) f32
        ctx = ctx * pl.reciprocal(l, approx=True)

        # This head's slice of the output projection (f32 accumulation on the MXU).
        part = jnp.dot(ctx.astype(cdt), wo_ref[g, i],
                       preferred_element_type=jnp.float32)          # (N, C_pad) f32
        contrib = part if contrib is None else contrib + part

    # Accumulate directly into the resident f32 output block (no scratch, no zero-init):
    # the first group writes (adding the bias once), later groups add.
    @pl.when(g == 0)
    def _():
        out_ref[0] = contrib + bo_ref[...]

    @pl.when(g > 0)
    def _():
        out_ref[0] = out_ref[0] + contrib


def multiscale_attention_pallas(x, params: PackedMSAParams, thw_shape):
    """Fused MultiScaleAttention forward (default config: no pooling, no dropout)."""
    B, N, C = x.shape
    assert C == params.dim
    C_pad = params.dim_padded
    G = params.group_size
    hd = params.head_dim
    ng = params.num_heads // G
    ghd = G * hd
    cdt = params.wqkv.dtype

    # Lane-dense, compute-dtype input slab (pad is a no-op when C is a multiple of 128).
    x_in = x if C_pad == C else jnp.pad(x, ((0, 0), (0, 0), (0, C_pad - C)))
    x_in = x_in.astype(cdt)

    kernel = functools.partial(_msa_kernel, group_heads=G, head_dim=hd)

    out = pl.pallas_call(
        kernel,
        out_shape=jax.ShapeDtypeStruct((B, N, C_pad), jnp.float32),
        grid_spec=pltpu.PrefetchScalarGridSpec(
            num_scalar_prefetch=0,
            grid=(B, ng),                                   # reduction (head groups) last
            in_specs=[
                pl.BlockSpec((1, N, C_pad), lambda b, g: (b, 0, 0)),        # x (per batch)
                pl.BlockSpec((ng, C_pad, 3 * ghd), lambda b, g: (0, 0, 0)),  # Wqkv (resident)
                pl.BlockSpec((ng, G, hd, C_pad), lambda b, g: (0, 0, 0, 0)), # Wproj (resident)
                pl.BlockSpec((1, C_pad), lambda b, g: (0, 0)),               # proj bias
            ],
            out_specs=pl.BlockSpec((1, N, C_pad), lambda b, g: (b, 0, 0)),
        ),
        compiler_params=pltpu.CompilerParams(
            dimension_semantics=("parallel", "arbitrary"),
            # <= 48 MiB so it is legal on v7x (64 MiB VMEM); raise toward ~100 MiB on
            # v5e/v6e once blocks grow beyond toy sizes.
            vmem_limit_bytes=48 * 1024 * 1024,
        ),
    )(x_in, params.wqkv, params.wo, params.bias)

    out = out if C_pad == C else out[:, :, :C]
    out = out.astype(x.dtype)
    # No pooling in the default config -> q_shape == thw_shape.
    return out, list(thw_shape)


class MultiScaleAttention:
    """Pallas-backed MultiScaleAttention (default config of the PyTorch module)."""

    def __init__(self, dim: int, num_heads: int = 8, key=None, dtype=jnp.float32,
                 compute_dtype=jnp.bfloat16, target_mxu_width: int = 256) -> None:
        assert dim % num_heads == 0
        self.dim = dim
        self.num_heads = num_heads
        key = jax.random.PRNGKey(0) if key is None else key
        kq, kk, kv, kp = jax.random.split(key, 4)
        init = 1.0 / (dim ** 0.5)
        # x @ W convention (torch nn.Linear stores the transpose).
        self.wq = jax.random.normal(kq, (dim, dim), dtype) * init
        self.wk = jax.random.normal(kk, (dim, dim), dtype) * init
        self.wv = jax.random.normal(kv, (dim, dim), dtype) * init
        self.w_proj = jax.random.normal(kp, (dim, dim), dtype) * init
        self.b_proj = jnp.zeros((dim,), dtype) + 0.01
        # Weight layout prep done ONCE at init (grouped / padded / cast / scale-folded).
        self.packed = pack_msa_params(self.wq, self.wk, self.wv, self.w_proj,
                                      self.b_proj, num_heads,
                                      compute_dtype=compute_dtype,
                                      target_mxu_width=target_mxu_width)

    def __call__(self, x, thw_shape):
        return multiscale_attention_pallas(x, self.packed, thw_shape)


def _reference(x, wq, wk, wv, w_proj, b_proj, num_heads):
    """Pure-JAX f32 reference matching the PyTorch forward (default config)."""
    B, N, C = x.shape
    hd = C // num_heads
    scale = float(hd) ** -0.5

    def split(t):  # (B, N, C) -> (B, H, N, hd)
        return t.reshape(B, N, num_heads, hd).transpose(0, 2, 1, 3)

    q, k, v = split(x @ wq), split(x @ wk), split(x @ wv)
    attn = jax.nn.softmax(jnp.einsum("bhnd,bhmd->bhnm", q, k) * scale, axis=-1)
    ctx = jnp.einsum("bhnm,bhmd->bhnd", attn, v)
    ctx = ctx.transpose(0, 2, 1, 3).reshape(B, N, C)
    return ctx @ w_proj + b_proj


if __name__ == "__main__":
    key = jax.random.PRNGKey(0)
    k_x, k_w = jax.random.split(key)

    # Small shapes consistent with the module: thw = (1, 4, 4) -> 16 patch tokens
    # + 1 cls token = 17 tokens, dim = 32, 4 heads (head_dim = 8), batch = 2.
    B, dim, num_heads = 2, 32, 4
    thw_shape = [1, 4, 4]
    N = 1 + thw_shape[0] * thw_shape[1] * thw_shape[2]

    x = jax.random.normal(k_x, (B, N, dim), dtype=jnp.float32)

    # Default (performance) path: bf16 MXU operands, f32 stats/accumulation.
    module = MultiScaleAttention(dim=dim, num_heads=num_heads, key=k_w)
    y, q_shape = module(x, thw_shape)
    y = jax.block_until_ready(y)

    assert y.shape == (B, N, dim) and y.dtype == x.dtype
    assert q_shape == thw_shape

    ref = _reference(x, module.wq, module.wk, module.wv,
                     module.w_proj, module.b_proj, num_heads)

    # bf16-operand path: compare in relative Frobenius norm (budget covers bf16 operand
    # rounding (~2^-9 per value) and the EUP approx reciprocal).
    rel_err = jnp.linalg.norm(y - ref) / jnp.linalg.norm(ref)
    assert float(rel_err) < 3e-2, f"bf16-path relative error too large: {float(rel_err)}"

    # f32-operand path through the SAME kernel: elementwise check (tolerance covers the
    # approx reciprocal of the deferred softmax normalization and MXU accumulation order).
    packed_f32 = pack_msa_params(module.wq, module.wk, module.wv, module.w_proj,
                                 module.b_proj, num_heads, compute_dtype=jnp.float32)
    y32, q_shape32 = multiscale_attention_pallas(x, packed_f32, thw_shape)
    y32 = jax.block_until_ready(y32)
    assert q_shape32 == thw_shape
    assert jnp.allclose(y32, ref, atol=2e-2, rtol=2e-2), "f32-path mismatch vs reference"

    print("KERNEL_OK")
</pallas_src>

<mosaic_0001>
module attributes {stable_mosaic.version = 11 : i64} {
  func.func @_msa_kernel(%arg0: i32, %arg1: i32, %arg2: memref<1x17x128xbf16, #tpu.memory_space<vmem>>, %arg3: memref<1x128x96xbf16, #tpu.memory_space<vmem>>, %arg4: memref<1x4x8x128xbf16, #tpu.memory_space<vmem>>, %arg5: memref<1x128xf32, #tpu.memory_space<vmem>>, %arg6: memref<1x17x128xf32, #tpu.memory_space<vmem>>) attributes {dimension_semantics = [#tpu.dimension_semantics<parallel>, #tpu.dimension_semantics<arbitrary>], iteration_bounds = array<i64: 2, 1>, scalar_prefetch = 0 : i64, scratch_operands = 0 : i64, tpu.core_type = #tpu.core_type<tc>, window_params = [{transform_indices = @transform_0, window_bounds = array<i64: 1, 17, 128>}, {pipeline_mode = #tpu.pipeline_mode<synchronous>, transform_indices = @transform_1, window_bounds = array<i64: 1, 128, 96>}, {pipeline_mode = #tpu.pipeline_mode<synchronous>, transform_indices = @transform_2, window_bounds = array<i64: 1, 4, 8, 128>}, {pipeline_mode = #tpu.pipeline_mode<synchronous>, transform_indices = @transform_3, window_bounds = array<i64: 1, 128>}, {transform_indices = @transform_4, window_bounds = array<i64: 1, 17, 128>}]} {
    %c0 = arith.constant 0 : index
    %c0_0 = arith.constant 0 : index
    %c0_1 = arith.constant 0 : index
    %0 = vector.load %arg2[%c0, %c0_0, %c0_1] : memref<1x17x128xbf16, #tpu.memory_space<vmem>>, vector<1x17x128xbf16>
    %1 = vector.shape_cast %0 : vector<1x17x128xbf16> to vector<17x128xbf16>
    %2 = arith.index_cast %arg1 : i32 to index
    %c0_2 = arith.constant 0 : index
    %c0_3 = arith.constant 0 : index
    %3 = vector.load %arg3[%2, %c0_2, %c0_3] : memref<1x128x96xbf16, #tpu.memory_space<vmem>>, vector<1x128x96xbf16>
    %4 = vector.shape_cast %3 : vector<1x128x96xbf16> to vector<128x96xbf16>
    %cst = arith.constant dense<0.000000e+00> : vector<17x96xf32>
    %5 = tpu.matmul %1, %4, %cst {dimension_numbers = #tpu.dot_dimension_numbers<[1], [0], [0], [1], [0, 0, 1, 1], [], []>} : vector<17x128xbf16>, vector<128x96xbf16>, vector<17x96xf32> -> vector<17x96xf32>
    %6 = vector.extract_strided_slice %5 {offsets = [0, 0], sizes = [17, 8], strides = [1, 1]} : vector<17x96xf32> to vector<17x8xf32>
    %7 = arith.truncf %6 : vector<17x8xf32> to vector<17x8xbf16>
    %8 = vector.extract_strided_slice %5 {offsets = [0, 32], sizes = [17, 8], strides = [1, 1]} : vector<17x96xf32> to vector<17x8xf32>
    %9 = arith.truncf %8 : vector<17x8xf32> to vector<17x8xbf16>
    %10 = vector.extract_strided_slice %5 {offsets = [0, 64], sizes = [17, 8], strides = [1, 1]} : vector<17x96xf32> to vector<17x8xf32>
    %11 = arith.truncf %10 : vector<17x8xf32> to vector<17x8xbf16>
    %cst_4 = arith.constant dense<0.000000e+00> : vector<17x17xf32>
    %12 = tpu.matmul %7, %9, %cst_4 {dimension_numbers = #tpu.dot_dimension_numbers<[1], [1], [0], [0], [0, 0, 1, 0], [], []>} : vector<17x8xbf16>, vector<17x8xbf16>, vector<17x17xf32> -> vector<17x17xf32>
    %cst_5 = arith.constant dense<0xFF800000> : vector<17xf32>
    %13 = vector.multi_reduction <maximumf>, %12, %cst_5 [1] : vector<17x17xf32> to vector<17xf32>
    %14 = vector.shape_cast %13 : vector<17xf32> to vector<17x1xf32>
    %15 = vector.broadcast %14 : vector<17x1xf32> to vector<17x17xf32>
    %16 = arith.subf %12, %15 : vector<17x17xf32>
    %17 = math.exp %16 : vector<17x17xf32>
    %cst_6 = arith.constant dense<0.000000e+00> : vector<17xf32>
    %18 = vector.multi_reduction <add>, %17, %cst_6 [1] : vector<17x17xf32> to vector<17xf32>
    %19 = vector.shape_cast %18 : vector<17xf32> to vector<17x1xf32>
    %20 = arith.truncf %17 : vector<17x17xf32> to vector<17x17xbf16>
    %cst_7 = arith.constant dense<0.000000e+00> : vector<17x8xf32>
    %21 = tpu.matmul %20, %11, %cst_7 {dimension_numbers = #tpu.dot_dimension_numbers<[1], [0], [0], [1], [0, 0, 1, 1], [], []>} : vector<17x17xbf16>, vector<17x8xbf16>, vector<17x8xf32> -> vector<17x8xf32>
    %22 = tpu.reciprocal %19 {approx = true} : vector<17x1xf32> -> vector<17x1xf32>
    %23 = vector.broadcast %22 : vector<17x1xf32> to vector<17x8xf32>
    %24 = arith.mulf %21, %23 : vector<17x8xf32>
    %25 = arith.truncf %24 : vector<17x8xf32> to vector<17x8xbf16>
    %26 = arith.index_cast %arg1 : i32 to index
    %c0_8 = arith.constant 0 : index
    %c0_9 = arith.constant 0 : index
    %c0_10 = arith.constant 0 : index
    %27 = vector.load %arg4[%26, %c0_8, %c0_9, %c0_10] : memref<1x4x8x128xbf16, #tpu.memory_space<vmem>>, vector<1x1x8x128xbf16>
    %28 = vector.shape_cast %27 : vector<1x1x8x128xbf16> to vector<8x128xbf16>
    %cst_11 = arith.constant dense<0.000000e+00> : vector<17x128xf32>
    %29 = tpu.matmul %25, %28, %cst_11 {dimension_numbers = #tpu.dot_dimension_numbers<[1], [0], [0], [1], [0, 0, 1, 1], [], []>} : vector<17x8xbf16>, vector<8x128xbf16>, vector<17x128xf32> -> vector<17x128xf32>
    %30 = vector.extract_strided_slice %5 {offsets = [0, 8], sizes = [17, 8], strides = [1, 1]} : vector<17x96xf32> to vector<17x8xf32>
    %31 = arith.truncf %30 : vector<17x8xf32> to vector<17x8xbf16>
    %32 = vector.extract_strided_slice %5 {offsets = [0, 40], sizes = [17, 8], strides = [1, 1]} : vector<17x96xf32> to vector<17x8xf32>
    %33 = arith.truncf %32 : vector<17x8xf32> to vector<17x8xbf16>
    %34 = vector.extract_strided_slice %5 {offsets = [0, 72], sizes = [17, 8], strides = [1, 1]} : vector<17x96xf32> to vector<17x8xf32>
    %35 = arith.truncf %34 : vector<17x8xf32> to vector<17x8xbf16>
    %cst_12 = arith.constant dense<0.000000e+00> : vector<17x17xf32>
    %36 = tpu.matmul %31, %33, %cst_12 {dimension_numbers = #tpu.dot_dimension_numbers<[1], [1], [0], [0], [0, 0, 1, 0], [], []>} : vector<17x8xbf16>, vector<17x8xbf16>, vector<17x17xf32> -> vector<17x17xf32>
    %cst_13 = arith.constant dense<0xFF800000> : vector<17xf32>
    %37 = vector.multi_reduction <maximumf>, %36, %cst_13 [1] : vector<17x17xf32> to vector<17xf32>
    %38 = vector.shape_cast %37 : vector<17xf32> to vector<17x1xf32>
    %39 = vector.broadcast %38 : vector<17x1xf32> to vector<17x17xf32>
    %40 = arith.subf %36, %39 : vector<17x17xf32>
    %41 = math.exp %40 : vector<17x17xf32>
    %cst_14 = arith.constant dense<0.000000e+00> : vector<17xf32>
    %42 = vector.multi_reduction <add>, %41, %cst_14 [1] : vector<17x17xf32> to vector<17xf32>
    %43 = vector.shape_cast %42 : vector<17xf32> to vector<17x1xf32>
    %44 = arith.truncf %41 : vector<17x17xf32> to vector<17x17xbf16>
    %cst_15 = arith.constant dense<0.000000e+00> : vector<17x8xf32>
    %45 = tpu.matmul %44, %35, %cst_15 {dimension_numbers = #tpu.dot_dimension_numbers<[1], [0], [0], [1], [0, 0, 1, 1], [], []>} : vector<17x17xbf16>, vector<17x8xbf16>, vector<17x8xf32> -> vector<17x8xf32>
    %46 = tpu.reciprocal %43 {approx = true} : vector<17x1xf32> -> vector<17x1xf32>
    %47 = vector.broadcast %46 : vector<17x1xf32> to vector<17x8xf32>
    %48 = arith.mulf %45, %47 : vector<17x8xf32>
    %49 = arith.truncf %48 : vector<17x8xf32> to vector<17x8xbf16>
    %50 = arith.index_cast %arg1 : i32 to index
    %c1 = arith.constant 1 : index
    %c0_16 = arith.constant 0 : index
    %c0_17 = arith.constant 0 : index
    %51 = vector.load %arg4[%50, %c1, %c0_16, %c0_17] : memref<1x4x8x128xbf16, #tpu.memory_space<vmem>>, vector<1x1x8x128xbf16>
    %52 = vector.shape_cast %51 : vector<1x1x8x128xbf16> to vector<8x128xbf16>
    %cst_18 = arith.constant dense<0.000000e+00> : vector<17x128xf32>
    %53 = tpu.matmul %49, %52, %cst_18 {dimension_numbers = #tpu.dot_dimension_numbers<[1], [0], [0], [1], [0, 0, 1, 1], [], []>} : vector<17x8xbf16>, vector<8x128xbf16>, vector<17x128xf32> -> vector<17x128xf32>
    %54 = arith.addf %29, %53 : vector<17x128xf32>
    %55 = vector.extract_strided_slice %5 {offsets = [0, 16], sizes = [17, 8], strides = [1, 1]} : vector<17x96xf32> to vector<17x8xf32>
    %56 = arith.truncf %55 : vector<17x8xf32> to vector<17x8xbf16>
    %57 = vector.extract_strided_slice %5 {offsets = [0, 48], sizes = [17, 8], strides = [1, 1]} : vector<17x96xf32> to vector<17x8xf32>
    %58 = arith.truncf %57 : vector<17x8xf32> to vector<17x8xbf16>
    %59 = vector.extract_strided_slice %5 {offsets = [0, 80], sizes = [17, 8], strides = [1, 1]} : vector<17x96xf32> to vector<17x8xf32>
    %60 = arith.truncf %59 : vector<17x8xf32> to vector<17x8xbf16>
    %cst_19 = arith.constant dense<0.000000e+00> : vector<17x17xf32>
    %61 = tpu.matmul %56, %58, %cst_19 {dimension_numbers = #tpu.dot_dimension_numbers<[1], [1], [0], [0], [0, 0, 1, 0], [], []>} : vector<17x8xbf16>, vector<17x8xbf16>, vector<17x17xf32> -> vector<17x17xf32>
    %cst_20 = arith.constant dense<0xFF800000> : vector<17xf32>
    %62 = vector.multi_reduction <maximumf>, %61, %cst_20 [1] : vector<17x17xf32> to vector<17xf32>
    %63 = vector.shape_cast %62 : vector<17xf32> to vector<17x1xf32>
    %64 = vector.broadcast %63 : vector<17x1xf32> to vector<17x17xf32>
    %65 = arith.subf %61, %64 : vector<17x17xf32>
    %66 = math.exp %65 : vector<17x17xf32>
    %cst_21 = arith.constant dense<0.000000e+00> : vector<17xf32>
    %67 = vector.multi_reduction <add>, %66, %cst_21 [1] : vector<17x17xf32> to vector<17xf32>
    %68 = vector.shape_cast %67 : vector<17xf32> to vector<17x1xf32>
    %69 = arith.truncf %66 : vector<17x17xf32> to vector<17x17xbf16>
    %cst_22 = arith.constant dense<0.000000e+00> : vector<17x8xf32>
    %70 = tpu.matmul %69, %60, %cst_22 {dimension_numbers = #tpu.dot_dimension_numbers<[1], [0], [0], [1], [0, 0, 1, 1], [], []>} : vector<17x17xbf16>, vector<17x8xbf16>, vector<17x8xf32> -> vector<17x8xf32>
    %71 = tpu.reciprocal %68 {approx = true} : vector<17x1xf32> -> vector<17x1xf32>
    %72 = vector.broadcast %71 : vector<17x1xf32> to vector<17x8xf32>
    %73 = arith.mulf %70, %72 : vector<17x8xf32>
    %74 = arith.truncf %73 : vector<17x8xf32> to vector<17x8xbf16>
    %75 = arith.index_cast %arg1 : i32 to index
    %c2 = arith.constant 2 : index
    %c0_23 = arith.constant 0 : index
    %c0_24 = arith.constant 0 : index
    %76 = vector.load %arg4[%75, %c2, %c0_23, %c0_24] : memref<1x4x8x128xbf16, #tpu.memory_space<vmem>>, vector<1x1x8x128xbf16>
    %77 = vector.shape_cast %76 : vector<1x1x8x128xbf16> to vector<8x128xbf16>
    %cst_25 = arith.constant dense<0.000000e+00> : vector<17x128xf32>
    %78 = tpu.matmul %74, %77, %cst_25 {dimension_numbers = #tpu.dot_dimension_numbers<[1], [0], [0], [1], [0, 0, 1, 1], [], []>} : vector<17x8xbf16>, vector<8x128xbf16>, vector<17x128xf32> -> vector<17x128xf32>
    %79 = arith.addf %54, %78 : vector<17x128xf32>
    %80 = vector.extract_strided_slice %5 {offsets = [0, 24], sizes = [17, 8], strides = [1, 1]} : vector<17x96xf32> to vector<17x8xf32>
    %81 = arith.truncf %80 : vector<17x8xf32> to vector<17x8xbf16>
    %82 = vector.extract_strided_slice %5 {offsets = [0, 56], sizes = [17, 8], strides = [1, 1]} : vector<17x96xf32> to vector<17x8xf32>
    %83 = arith.truncf %82 : vector<17x8xf32> to vector<17x8xbf16>
    %84 = vector.extract_strided_slice %5 {offsets = [0, 88], sizes = [17, 8], strides = [1, 1]} : vector<17x96xf32> to vector<17x8xf32>
    %85 = arith.truncf %84 : vector<17x8xf32> to vector<17x8xbf16>
    %cst_26 = arith.constant dense<0.000000e+00> : vector<17x17xf32>
    %86 = tpu.matmul %81, %83, %cst_26 {dimension_numbers = #tpu.dot_dimension_numbers<[1], [1], [0], [0], [0, 0, 1, 0], [], []>} : vector<17x8xbf16>, vector<17x8xbf16>, vector<17x17xf32> -> vector<17x17xf32>
    %cst_27 = arith.constant dense<0xFF800000> : vector<17xf32>
    %87 = vector.multi_reduction <maximumf>, %86, %cst_27 [1] : vector<17x17xf32> to vector<17xf32>
    %88 = vector.shape_cast %87 : vector<17xf32> to vector<17x1xf32>
    %89 = vector.broadcast %88 : vector<17x1xf32> to vector<17x17xf32>
    %90 = arith.subf %86, %89 : vector<17x17xf32>
    %91 = math.exp %90 : vector<17x17xf32>
    %cst_28 = arith.constant dense<0.000000e+00> : vector<17xf32>
    %92 = vector.multi_reduction <add>, %91, %cst_28 [1] : vector<17x17xf32> to vector<17xf32>
    %93 = vector.shape_cast %92 : vector<17xf32> to vector<17x1xf32>
    %94 = arith.truncf %91 : vector<17x17xf32> to vector<17x17xbf16>
    %cst_29 = arith.constant dense<0.000000e+00> : vector<17x8xf32>
    %95 = tpu.matmul %94, %85, %cst_29 {dimension_numbers = #tpu.dot_dimension_numbers<[1], [0], [0], [1], [0, 0, 1, 1], [], []>} : vector<17x17xbf16>, vector<17x8xbf16>, vector<17x8xf32> -> vector<17x8xf32>
    %96 = tpu.reciprocal %93 {approx = true} : vector<17x1xf32> -> vector<17x1xf32>
    %97 = vector.broadcast %96 : vector<17x1xf32> to vector<17x8xf32>
    %98 = arith.mulf %95, %97 : vector<17x8xf32>
    %99 = arith.truncf %98 : vector<17x8xf32> to vector<17x8xbf16>
    %100 = arith.index_cast %arg1 : i32 to index
    %c3 = arith.constant 3 : index
    %c0_30 = arith.constant 0 : index
    %c0_31 = arith.constant 0 : index
    %101 = vector.load %arg4[%100, %c3, %c0_30, %c0_31] : memref<1x4x8x128xbf16, #tpu.memory_space<vmem>>, vector<1x1x8x128xbf16>
    %102 = vector.shape_cast %101 : vector<1x1x8x128xbf16> to vector<8x128xbf16>
    %cst_32 = arith.constant dense<0.000000e+00> : vector<17x128xf32>
    %103 = tpu.matmul %99, %102, %cst_32 {dimension_numbers = #tpu.dot_dimension_numbers<[1], [0], [0], [1], [0, 0, 1, 1], [], []>} : vector<17x8xbf16>, vector<8x128xbf16>, vector<17x128xf32> -> vector<17x128xf32>
    %104 = arith.addf %79, %103 : vector<17x128xf32>
    %c0_i32 = arith.constant 0 : i32
    %105 = arith.cmpi eq, %arg1, %c0_i32 : i32
    %106 = arith.extui %105 : i1 to i32
    %c0_i32_33 = arith.constant 0 : i32
    %107 = arith.cmpi ne, %106, %c0_i32_33 : i32
    scf.if %107 {
      %c0_36 = arith.constant 0 : index
      %c0_37 = arith.constant 0 : index
      %111 = vector.load %arg5[%c0_36, %c0_37] : memref<1x128xf32, #tpu.memory_space<vmem>>, vector<1x128xf32>
      %112 = vector.broadcast %111 : vector<1x128xf32> to vector<17x128xf32>
      %113 = arith.addf %104, %112 : vector<17x128xf32>
      %c0_38 = arith.constant 0 : index
      %c0_39 = arith.constant 0 : index
      %c0_40 = arith.constant 0 : index
      %114 = vector.load %arg6[%c0_38, %c0_39, %c0_40] : memref<1x17x128xf32, #tpu.memory_space<vmem>>, vector<1x17x128xf32>
      %115 = vector.shape_cast %114 : vector<1x17x128xf32> to vector<17x128xf32>
      %116 = vector.shape_cast %113 : vector<17x128xf32> to vector<1x17x128xf32>
      tpu.vector_store %arg6[%c0_38, %c0_39, %c0_40], %116 {strides = array<i32>} : memref<1x17x128xf32, #tpu.memory_space<vmem>>, vector<1x17x128xf32>,
    } else {
    }
    %c0_i32_34 = arith.constant 0 : i32
    %108 = arith.cmpi sgt, %arg1, %c0_i32_34 : i32
    %109 = arith.extui %108 : i1 to i32
    %c0_i32_35 = arith.constant 0 : i32
    %110 = arith.cmpi ne, %109, %c0_i32_35 : i32
    scf.if %110 {
      %c0_36 = arith.constant 0 : index
      %c0_37 = arith.constant 0 : index
      %c0_38 = arith.constant 0 : index
      %111 = vector.load %arg6[%c0_36, %c0_37, %c0_38] : memref<1x17x128xf32, #tpu.memory_space<vmem>>, vector<1x17x128xf32>
      %112 = vector.shape_cast %111 : vector<1x17x128xf32> to vector<17x128xf32>
      %113 = arith.addf %112, %104 : vector<17x128xf32>
      %c0_39 = arith.constant 0 : index
      %c0_40 = arith.constant 0 : index
      %c0_41 = arith.constant 0 : index
      %114 = vector.load %arg6[%c0_39, %c0_40, %c0_41] : memref<1x17x128xf32, #tpu.memory_space<vmem>>, vector<1x17x128xf32>
      %115 = vector.shape_cast %114 : vector<1x17x128xf32> to vector<17x128xf32>
      %116 = vector.shape_cast %113 : vector<17x128xf32> to vector<1x17x128xf32>
      tpu.vector_store %arg6[%c0_39, %c0_40, %c0_41], %116 {strides = array<i32>} : memref<1x17x128xf32, #tpu.memory_space<vmem>>, vector<1x17x128xf32>,
    } else {
    }
    return
  }
  func.func @transform_0(%arg0: i32, %arg1: i32) -> (i32, i32, i32) {
    %c0_i32 = arith.constant 0 : i32
    %c0_i32_0 = arith.constant 0 : i32
    %c0_i32_1 = arith.constant 0 : i32
    return %arg0, %c0_i32, %c0_i32_0 : i32, i32, i32
  }
  func.func @transform_1(%arg0: i32, %arg1: i32) -> (i32, i32, i32) {
    %c0_i32 = arith.constant 0 : i32
    %c0_i32_0 = arith.constant 0 : i32
    %c0_i32_1 = arith.constant 0 : i32
    %c0_i32_2 = arith.constant 0 : i32
    return %c0_i32, %c0_i32_0, %c0_i32_1 : i32, i32, i32
  }
  func.func @transform_2(%arg0: i32, %arg1: i32) -> (i32, i32, i32, i32) {
    %c0_i32 = arith.constant 0 : i32
    %c0_i32_0 = arith.constant 0 : i32
    %c0_i32_1 = arith.constant 0 : i32
    %c0_i32_2 = arith.constant 0 : i32
    %c0_i32_3 = arith.constant 0 : i32
    return %c0_i32, %c0_i32_0, %c0_i32_1, %c0_i32_2 : i32, i32, i32, i32
  }
  func.func @transform_3(%arg0: i32, %arg1: i32) -> (i32, i32) {
    %c0_i32 = arith.constant 0 : i32
    %c0_i32_0 = arith.constant 0 : i32
    %c0_i32_1 = arith.constant 0 : i32
    return %c0_i32, %c0_i32_0 : i32, i32
  }
  func.func @transform_4(%arg0: i32, %arg1: i32) -> (i32, i32, i32) {
    %c0_i32 = arith.constant 0 : i32
    %c0_i32_0 = arith.constant 0 : i32
    %c0_i32_1 = arith.constant 0 : i32
    return %arg0, %c0_i32, %c0_i32_0 : i32, i32, i32
  }
}

</mosaic_0001>

<llo_original>
// kernel: tpu_custom_call.1
$region0: #{tpu_custom_call.1}
  #allocation0 [shape = 'u32[]', space=smem, size = 0x4, offset = 0x4, fixed_abs, tag = 'smem constant byte address 0x4 - core index']
  #allocation1 [shape = 'u32[144,128]{1,0:T(1,128)}', space=vmem, size = 0x12000, scoped, tag = 'internal scratch']
  %s0 = inlined_call_operand.vmem [shape: bf16[2,17,128], index: 0, kind: input, shape index: {}]
  %s1 = inlined_call_operand.vmem [shape: bf16[1,128,96], index: 1, kind: input, shape index: {}]
  %s2 = inlined_call_operand.vmem [shape: bf16[1,4,8,128], index: 2, kind: input, shape index: {}]
  %s3 = inlined_call_operand.vmem [shape: f32[1,128], index: 3, kind: input, shape index: {}]
  %s4 = inlined_call_operand.vmem [shape: f32[2,17,128], index: 4, kind: output, shape index: {}]
  %s5 = sld [smem:[#allocation0]]
  $region57: #{tpu_custom_call.1} parent=0
    _
  %s7 = ssub.s32 1, %s5
  %s8 = scalar_select 0, %s7, %s5
  loop: start=0, step=1, limit=4
  $region2: #{tpu_custom_call.1} parent=0 // loop_pre_header
    _
  $region3: #{tpu_custom_call.1} parent=0 // loop_header
    %s10 = sphi 0, %s14
    %p11 = scmp.ge.s32.totalorder %s10, 4
    %s17 = sphi 0, %s29
    %s18 = sphi 0, %s25
    %s19 = sphi 0, %s17
    %s20 = sphi 0, %s18
    %s21 = sphi 0, %s19
    %s22 = sphi 0, %s20
    %s32 = sphi 0, %s34
    %s35 = sphi 0, %s32
    %s36 = sphi 0, %s35
    %s52 = sphi 0, %s36
    %s56 = sphi 0, %s56
    %s58 = sphi 0, %s56
    %s59 = sphi 0, %s58
    %s73 = sphi 0, %s59
    %s77 = sphi 0, %s77
    %s79 = sphi 0, %s77
    %s80 = sphi 0, %s79
    %s94 = sphi 0, %s80
    %s98 = sphi 0, %s98
    %s100 = sphi 0, %s98
    %s101 = sphi 0, %s100
    %s115 = sphi 0, %s101
    %s121 = sphi 0, %s123
    %s124 = sphi 0, %s121
    %s125 = sphi 0, %s124
    %s141 = sphi 0, %s125
  $region4: #{tpu_custom_call.1} parent=0 // loop_header_branch
    %13 = sbr.rel (%p11) target = $region8
  $region5: #{tpu_custom_call.1} parent=0 // loop_body
    %s15 = ssub.s32 %s10, 1
    %s16 = ssub.s32 %s10, 2
    %s23 = sadd.s32 1, %s18
    %p24 = scmp.ge.s32.totalorder %s23, 1
    %s25 = scalar_select %p24, 0, %s23
    %s26 = sadd.s32 1, %s17
    %s27 = scalar_select %p24, %s26, %s17
    %p28 = scmp.ge.s32.totalorder %s27, 2
    %s29 = scalar_select %p28, 0, %s27
    %s30 = ssub.s32 %s17, %s29
    %p31 = scmp.eq.s32.totalorder %s30, 0
    %s33 = sadd.s32 %s32, 1
    %s34 = scalar_select %p31, %s32, %s33
    %p37 = pneg %p31
    %p38 = scmp.eq.s32.totalorder %s10, 1
    %p39 = por %p37, %p38
    %p40 = scmp.ne.s32.totalorder %s32, %s35
    %p41 = scmp.eq.s32.totalorder %s10, 0
    %p42 = por %p40, %p41
    %p43 = scmp.ne.s32.totalorder %s32, %s35
    %p44 = scmp.eq.s32.totalorder %s15, 1
    %p45 = por %p43, %p44
    %p46 = scmp.ne.s32.totalorder %s35, %s36
    %p47 = scmp.eq.s32.totalorder %s15, 0
    %p48 = por %p46, %p47
    %p49 = scmp.ne.s32.totalorder %s35, %s36
    %p50 = scmp.eq.s32.totalorder %s16, 1
    %p51 = por %p49, %p50
    %p53 = scmp.ne.s32.totalorder %s36, %s52
    %p54 = scmp.eq.s32.totalorder %s16, 0
    %p55 = por %p53, %p54
    %s57 = sadd.s32 %s56, 1
    %p60 = scmp.eq.s32.totalorder %s10, 1
    %p61 = scmp.ne.s32.totalorder %s56, %s58
    %p62 = scmp.eq.s32.totalorder %s10, 0
    %p63 = por %p61, %p62
    %p64 = scmp.ne.s32.totalorder %s56, %s58
    %p65 = scmp.eq.s32.totalorder %s15, 1
    %p66 = por %p64, %p65
    %p67 = scmp.ne.s32.totalorder %s58, %s59
    %p68 = scmp.eq.s32.totalorder %s15, 0
    %p69 = por %p67, %p68
    %p70 = scmp.ne.s32.totalorder %s58, %s59
    %p71 = scmp.eq.s32.totalorder %s16, 1
    %p72 = por %p70, %p71
    %p74 = scmp.ne.s32.totalorder %s59, %s73
    %p75 = scmp.eq.s32.totalorder %s16, 0
    %p76 = por %p74, %p75
    %s78 = sadd.s32 %s77, 1
    %p81 = scmp.eq.s32.totalorder %s10, 1
    %p82 = scmp.ne.s32.totalorder %s77, %s79
    %p83 = scmp.eq.s32.totalorder %s10, 0
    %p84 = por %p82, %p83
    %p85 = scmp.ne.s32.totalorder %s77, %s79
    %p86 = scmp.eq.s32.totalorder %s15, 1
    %p87 = por %p85, %p86
    %p88 = scmp.ne.s32.totalorder %s79, %s80
    %p89 = scmp.eq.s32.totalorder %s15, 0
    %p90 = por %p88, %p89
    %p91 = scmp.ne.s32.totalorder %s79, %s80
    %p92 = scmp.eq.s32.totalorder %s16, 1
    %p93 = por %p91, %p92
    %p95 = scmp.ne.s32.totalorder %s80, %s94
    %p96 = scmp.eq.s32.totalorder %s16, 0
    %p97 = por %p95, %p96
    %s99 = sadd.s32 %s98, 1
    %p102 = scmp.eq.s32.totalorder %s10, 1
    %p103 = scmp.ne.s32.totalorder %s98, %s100
    %p104 = scmp.eq.s32.totalorder %s10, 0
    %p105 = por %p103, %p104
    %p106 = scmp.ne.s32.totalorder %s98, %s100
    %p107 = scmp.eq.s32.totalorder %s15, 1
    %p108 = por %p106, %p107
    %p109 = scmp.ne.s32.totalorder %s100, %s101
    %p110 = scmp.eq.s32.totalorder %s15, 0
    %p111 = por %p109, %p110
    %p112 = scmp.ne.s32.totalorder %s100, %s101
    %p113 = scmp.eq.s32.totalorder %s16, 1
    %p114 = por %p112, %p113
    %p116 = scmp.ne.s32.totalorder %s101, %s115
    %p117 = scmp.eq.s32.totalorder %s16, 0
    %p118 = por %p116, %p117
    %s119 = ssub.s32 %s17, %s29
    %p120 = scmp.eq.s32.totalorder %s119, 0
    %s122 = sadd.s32 %s121, 1
    %s123 = scalar_select %p120, %s121, %s122
    %p126 = pneg %p120
    %p127 = scmp.eq.s32.totalorder %s10, 1
    %p128 = por %p126, %p127
    %p129 = scmp.ne.s32.totalorder %s121, %s124
    %p130 = scmp.eq.s32.totalorder %s10, 0
    %p131 = por %p129, %p130
    %p132 = scmp.ne.s32.totalorder %s121, %s124
    %p133 = scmp.eq.s32.totalorder %s15, 1
    %p134 = por %p132, %p133
    %p135 = scmp.ne.s32.totalorder %s124, %s125
    %p136 = scmp.eq.s32.totalorder %s15, 0
    %p137 = por %p135, %p136
    %p138 = scmp.ne.s32.totalorder %s124, %s125
    %p139 = scmp.eq.s32.totalorder %s16, 1
    %p140 = por %p138, %p139
    %p142 = scmp.ne.s32.totalorder %s125, %s141
    %p143 = scmp.eq.s32.totalorder %s16, 0
    %p144 = por %p142, %p143
    %p145 = scmp.le.s32.totalorder 1, %s10
    %p146 = scmp.lt.s32.totalorder %s10, 3
    %p147 = pnand %p145, %p146
    %p148 = pneg %p147
    // Predicated region
    $region9: #{tpu_custom_call.1} parent=5 // pred_check
      _
    $region10: #{tpu_custom_call.1} parent=5 // pred_check_branch
      %150 = sbr.rel (%p147) target = $region12
    $region11: #{tpu_custom_call.1} parent=5 // pred_region
      %s151 = ssub.s32 %s10, 1
      // Predicated region
      $region13: #{tpu_custom_call.1} parent=11 // pred_check
        %p152 = pneg %p69
      $region14: #{tpu_custom_call.1} parent=11 // pred_check_branch
        %154 = sbr.rel (%p152) target = $region16
      $region15: #{tpu_custom_call.1} parent=11 // pred_region
        _
      $region16: #{tpu_custom_call.1} parent=11 // pred_fallthru
        _
      // Predicated region
      $region17: #{tpu_custom_call.1} parent=11 // pred_check
        %p155 = pneg %p90
      $region18: #{tpu_custom_call.1} parent=11 // pred_check_branch
        %157 = sbr.rel (%p155) target = $region20
      $region19: #{tpu_custom_call.1} parent=11 // pred_region
        _
      $region20: #{tpu_custom_call.1} parent=11 // pred_fallthru
        _
      // Predicated region
      $region21: #{tpu_custom_call.1} parent=11 // pred_check
        %p158 = pneg %p111
      $region22: #{tpu_custom_call.1} parent=11 // pred_check_branch
        %160 = sbr.rel (%p158) target = $region24
      $region23: #{tpu_custom_call.1} parent=11 // pred_region
        _
      $region24: #{tpu_custom_call.1} parent=11 // pred_fallthru
        _
    $region12: #{tpu_custom_call.1} parent=5 // pred_fallthru
      _
    %p161 = scmp.lt.s32.totalorder %s10, 2
    // Predicated region
    $region25: #{tpu_custom_call.1} parent=5 // pred_check
      %p162 = pneg %p161
    $region26: #{tpu_custom_call.1} parent=5 // pred_check_branch
      %164 = sbr.rel (%p162) target = $region28
    $region27: #{tpu_custom_call.1} parent=5 // pred_region
      // Predicated region
      $region29: #{tpu_custom_call.1} parent=27 // pred_check
        %p165 = pneg %p42
      $region30: #{tpu_custom_call.1} parent=27 // pred_check_branch
        %167 = sbr.rel (%p165) target = $region32
      $region31: #{tpu_custom_call.1} parent=27 // pred_region
        %p168 = scmp.lt.s32.totalorder %s17, 1
        %s169 = scalar_select %p168, %s17, 1
        %s170 = smul.addr %s169, 3
        %s171 = smul.addr %s170, 4
        %s172 = scalar_lea.vmem %s0, %s171
      $region32: #{tpu_custom_call.1} parent=27 // pred_fallthru
        _
    $region28: #{tpu_custom_call.1} parent=5 // pred_fallthru
      _
    %p173 = scmp.le.s32.totalorder 1, %s10
    %p174 = scmp.lt.s32.totalorder %s10, 3
    %p175 = pnand %p173, %p174
    %p176 = pneg %p175
    // Predicated region
    $region33: #{tpu_custom_call.1} parent=5 // pred_check
      _
    $region34: #{tpu_custom_call.1} parent=5 // pred_check_branch
      %178 = sbr.rel (%p175) target = $region36
    $region35: #{tpu_custom_call.1} parent=5 // pred_region
      %s179 = ssub.s32 %s10, 1
      %p180 = scmp.lt.s32.totalorder %s19, 1
      %s181 = scalar_select %p180, %s19, 1
      %s182 = smul.addr %s181, 3
      %s183 = smul.addr %s182, 4
      %s184 = scalar_lea.vmem %s0, %s183
      %p185 = pneg %p48
      %p186 = pneg %p45
      %p187 = pneg %p69
      %p188 = pneg %p66
      %p189 = pneg %p90
      %p190 = pneg %p87
      %p191 = pneg %p111
      %p192 = pneg %p108
      %p193 = pneg %p137
      %p194 = pneg %p134
      %p195 = scmp.lt.s32.totalorder %s19, 1
      %s196 = scalar_select %p195, %s19, 1
      %s197 = smul.addr %s196, 3
      %s198 = smul.addr %s197, 8
      %s199 = scalar_lea.vmem %s4, %s198
      %p200 = scmp.lt.s32.totalorder %s19, 1
      %s201 = scalar_select %p200, %s19, 1
      %s202 = smul.addr %s201, 3
      %s203 = smul.addr %s202, 4
      %s204 = scalar_lea.vmem %s0, %s203
      %p205 = scmp.lt.s32.totalorder %s19, 1
      %s206 = scalar_select %p205, %s19, 1
      %s207 = smul.addr %s206, 3
      %s208 = smul.addr %s207, 8
      %s209 = scalar_lea.vmem %s4, %s208
      %v211 = vld [vmem:[%s204] sm:$0xf]
      %v212 = vld [vmem:[%s204 + $0x4] sm:$0xf]
      %v213 = vld [vmem:[%s204 + $0x8] sm:$0x1]
      %s214 = smul.u32 %s20, 16
      %s215 = smul.addr %s214, 4
      %s216 = scalar_lea.vmem %s1, %s215
      %v217 = vld [vmem:[%s216] sm:$0xf]
      %v218 = vld [vmem:[%s216 + $0x4] sm:$0xf]
      %v219 = vld [vmem:[%s216 + $0x8] sm:$0xf]
      %v220 = vld [vmem:[%s216 + $0xc] sm:$0xf]
      %v221 = vld [vmem:[%s216 + $0x10] sm:$0xf]
      %v222 = vld [vmem:[%s216 + $0x14] sm:$0xf]
      %v223 = vld [vmem:[%s216 + $0x18] sm:$0xf]
      %v224 = vld [vmem:[%s216 + $0x1c] sm:$0xf]
      %v225 = vld [vmem:[%s216 + $0x20] sm:$0xf]
      %v226 = vld [vmem:[%s216 + $0x24] sm:$0xf]
      %v227 = vld [vmem:[%s216 + $0x28] sm:$0xf]
      %v228 = vld [vmem:[%s216 + $0x2c] sm:$0xf]
      %v229 = vld [vmem:[%s216 + $0x30] sm:$0xf]
      %v230 = vld [vmem:[%s216 + $0x34] sm:$0xf]
      %v231 = vld [vmem:[%s216 + $0x38] sm:$0xf]
      %v232 = vld [vmem:[%s216 + $0x3c] sm:$0xf]
      %v236 = vunpack.c.l.b16 %v211
      %v237 = vunpack.c.l.b16 %v212
      %v238 = vunpack.c.l.b16 %v213
      %v239 = vpack.c.b16 %v237, %v236
      %v240 = vpack.c.b16 %v238, %v238
      %v259 = vunpack.c.l.b16 %v217
      %v260 = vunpack.c.l.b16 %v218
      %v261 = vunpack.c.l.b16 %v219
      %v262 = vunpack.c.l.b16 %v220
      %v263 = vunpack.c.l.b16 %v221
      %v264 = vunpack.c.l.b16 %v222
      %v265 = vunpack.c.l.b16 %v223
      %v266 = vunpack.c.l.b16 %v224
      %v267 = vunpack.c.l.b16 %v225
      %v268 = vunpack.c.l.b16 %v226
      %v269 = vunpack.c.l.b16 %v227
      %v270 = vunpack.c.l.b16 %v228
      %v271 = vunpack.c.l.b16 %v229
      %v272 = vunpack.c.l.b16 %v230
      %v273 = vunpack.c.l.b16 %v231
      %v274 = vunpack.c.l.b16 %v232
      %v275 = vpack.c.b16 %v260, %v259
      %v276 = vpack.c.b16 %v262, %v261
      %v277 = vpack.c.b16 %v264, %v263
      %v278 = vpack.c.b16 %v266, %v265
      %v279 = vpack.c.b16 %v268, %v267
      %v280 = vpack.c.b16 %v270, %v269
      %v281 = vpack.c.b16 %v272, %v271
      %v282 = vpack.c.b16 %v274, %v273
      %291 = vmatprep.subr.bf16.mxu0 0
      %292 = vmatpush1.bf16.msra.mxu0 %v282
      %293 = vmatprep.subr.bf16.mxu0 0
      %294 = vmatpush1.bf16.msra.mxu0 %v281
      %295 = vmatprep.subr.bf16.mxu0 0
      %296 = vmatpush1.bf16.msra.mxu0 %v280
      %297 = vmatprep.subr.bf16.mxu0 0
      %298 = vmatpush1.bf16.msra.mxu0 %v279
      %299 = vmatprep.subr.bf16.mxu0 0
      %300 = vmatpush1.bf16.msra.mxu0 %v278
      %301 = vmatprep.subr.bf16.mxu0 0
      %302 = vmatpush1.bf16.msra.mxu0 %v277
      %303 = vmatprep.subr.bf16.mxu0 0
      %304 = vmatpush1.bf16.msra.mxu0 %v276
      %305 = vmatprep.subr.bf16.mxu0 0
      %306 = vmatpush1.bf16.msra.mxu0 %v275
      %307 = vmatprep.subr.bf16.mxu0 0
      %308 = vmatpush2.bf16.msra.mxu0 0
      %309 = vmatprep.subr.bf16.mxu0 0
      %310 = vmatpush2.bf16.msra.mxu0 0
      %311 = vmatprep.subr.bf16.mxu0 0
      %312 = vmatpush2.bf16.msra.mxu0 0
      %313 = vmatprep.subr.bf16.mxu0 0
      %314 = vmatpush2.bf16.msra.mxu0 0
      %315 = vmatprep.subr.bf16.mxu0 0
      %316 = vmatpush2.bf16.msra.mxu0 0
      %317 = vmatprep.subr.bf16.mxu0 0
      %318 = vmatpush2.bf16.msra.mxu0 0
      %319 = vmatprep.subr.bf16.mxu0 0
      %320 = vmatpush2.bf16.msra.mxu0 0
      %321 = vmatprep.subr.bf16.mxu0 0
      %322 = vmatpush2.bf16.msra.mxu0 0
      %323 = vmatprep.mubr.bf16.mxu0 0
      %324 = vmatmul.mubr.bf16.gmra.mxu0 %v239
      %v325 = vpop.f32.mrf.mxu0
      %v326 = vadd.f32 0.0, %v325
      %v327 = vpop.f32.mrf.mxu0
      %v328 = vpop.f32.mrf.mxu0
      %v329 = vadd.f32 0.0, %v328
      %v330 = vpop.f32.mrf.mxu0
      %331 = vmatprep.mubr.bf16.mxu0 0
      %332 = vmatmul.mubr.bf16.gmra.mxu0 %v240
      %v333 = vpop.f32.mrf.mxu0
      %v334 = vadd.f32 0.0, %v333
      %v335 = vpop.f32.mrf.mxu0
      %v336 = vpop.f32.mrf.mxu0
      %v337 = vpop.f32.mrf.mxu0
      %338 = vdwg.mxu0
      %v339 = vpack.c.bf16 %v329, %v326
      %v340 = vpack.c.bf16 %v334, %v334
      %343 = vrot.lane.b32.xlu0 %v339, 96
      %v344 = vpop.permute.xlu0 %343
      %345 = vrot.lane.b32.xlu0 %v340, 96
      %v346 = vpop.permute.xlu0 %345
      %vm347 = vcmask 64512
      %v349 = vsel %vm347, %v339, 0
      %v352 = vsel %vm347, %v340, 0
      %v355 = vsel %vm347, %v344, 0
      %v358 = vsel %vm347, %v346, 0
      %360 = vmatprep.subr.bf16.mxu0 0
      %361 = vmatpush1.bf16.xpose.msra.mxu0 0
      %362 = vmatprep.subr.bf16.mxu0 0
      %363 = vmatpush1.bf16.xpose.msra.mxu0 0
      %364 = vmatprep.subr.bf16.mxu0 0
      %365 = vmatpush1.bf16.xpose.msra.mxu0 0
      %366 = vmatprep.subr.bf16.mxu0 0
      %367 = vmatpush1.bf16.xpose.msra.mxu0 0
      %368 = vmatprep.subr.bf16.mxu0 0
      %369 = vmatpush1.bf16.xpose.msra.mxu0 0
      %370 = vmatprep.subr.bf16.mxu0 0
      %371 = vmatpush1.bf16.xpose.msra.mxu0 0
      %372 = vmatprep.subr.bf16.mxu0 0
      %373 = vmatpush1.bf16.xpose.msra.mxu0 %v358
      %374 = vmatprep.subr.bf16.mxu0 0
      %375 = vmatpush1.bf16.xpose.msra.mxu0 %v355
      %376 = vmatprep.subr.bf16.mxu0 0
      %377 = vmatpush2.bf16.xpose.msra.mxu0 0
      %378 = vmatprep.subr.bf16.mxu0 0
      %379 = vmatpush2.bf16.xpose.msra.mxu0 0
      %380 = vmatprep.subr.bf16.mxu0 0
      %381 = vmatpush2.bf16.xpose.msra.mxu0 0
      %382 = vmatprep.subr.bf16.mxu0 0
      %383 = vmatpush2.bf16.xpose.msra.mxu0 0
      %384 = vmatprep.subr.bf16.mxu0 0
      %385 = vmatpush2.bf16.xpose.msra.mxu0 0
      %386 = vmatprep.subr.bf16.mxu0 0
      %387 = vmatpush2.bf16.xpose.msra.mxu0 0
      %388 = vmatprep.subr.bf16.mxu0 0
      %389 = vmatpush2.bf16.xpose.msra.mxu0 0
      %390 = vmatprep.subr.bf16.mxu0 0
      %391 = vmatpush2.bf16.xpose.msra.mxu0 0
      %392 = vmatprep.mubr.bf16.mxu0 0
      %393 = vmatmul.mubr.bf16.gmra.mxu0 %v349
      %v394 = vpop.f32.mrf.mxu0
      %v395 = vadd.f32 0.0, %v394
      %v396 = vpop.f32.mrf.mxu0
      %v397 = vpop.f32.mrf.mxu0
      %v398 = vadd.f32 0.0, %v397
      %v399 = vpop.f32.mrf.mxu0
      %400 = vmatprep.mubr.bf16.mxu0 0
      %401 = vmatmul.mubr.bf16.gmra.mxu0 %v352
      %v402 = vpop.f32.mrf.mxu0
      %v403 = vadd.f32 0.0, %v402
      %v404 = vpop.f32.mrf.mxu0
      %v405 = vpop.f32.mrf.mxu0
      %v406 = vpop.f32.mrf.mxu0
      %407 = vdwg.mxu0
      %vm408 = vcmask 138240
      %v409 = vsel %vm408, %v395, -inf
      %410 = vmax.xlane.f32.xlu0 %v409
      %v411 = vpop.xlane.xlu0 %410
      %v412 = vsel %vm408, %v398, -inf
      %413 = vmax.xlane.f32.xlu0 %v412
      %v414 = vpop.xlane.xlu0 %413
      %vm415 = vcmask 131072
      %v416 = vsel %vm415, %v403, -inf
      %417 = vmax.xlane.f32.xlu0 %v416
      %v418 = vpop.xlane.xlu0 %417
      %v419 = vsub.f32 %v395, %v411
      %v420 = vsub.f32 %v398, %v414
      %v421 = vsub.f32 %v403, %v418
      %v422 = vmul.f32 %v419, 1.442695
      %v423 = vpow.pop %v422
      %v424 = vmul.f32 %v420, 1.442695
      %v425 = vpow.pop %v424
      %v426 = vmul.f32 %v421, 1.442695
      %v427 = vpow.pop %v426
      %v428 = vsel %vm408, %v423, 0.0
      %429 = vadd.xlane.f32.xlu0 %v428
      %v430 = vpop.xlane.xlu0 %429
      %v431 = vsel %vm408, %v425, 0.0
      %432 = vadd.xlane.f32.xlu0 %v431
      %v433 = vpop.xlane.xlu0 %432
      %v434 = vsel %vm415, %v427, 0.0
      %435 = vadd.xlane.f32.xlu0 %v434
      %v436 = vpop.xlane.xlu0 %435
      %v437 = vpack.c.bf16 %v425, %v423
      %v438 = vpack.c.bf16 %v427, %v427
      %439 = vrot.lane.b32.xlu0 %v339, 64
      %v440 = vpop.permute.xlu0 %439
      %441 = vrot.lane.b32.xlu0 %v340, 64
      %v442 = vpop.permute.xlu0 %441
      %v445 = vsel %vm408, %v437, 0
      %v448 = vsel %vm408, %v438, 0
      %vm450 = vcmask 1040384
      %v451 = vsel 0, 4294967295, 65535
      %v452 = vsel %vm450, %v451, 0
      %v454 = vand.u32 %v442, %v452
      %456 = vmatprep.subr.bf16.mxu0 0
      %457 = vmatpush1.bf16.msra.mxu0 0
      %458 = vmatprep.subr.bf16.mxu0 0
      %459 = vmatpush1.bf16.msra.mxu0 0
      %460 = vmatprep.subr.bf16.mxu0 0
      %461 = vmatpush1.bf16.msra.mxu0 0
      %462 = vmatprep.subr.bf16.mxu0 0
      %463 = vmatpush1.bf16.msra.mxu0 0
      %464 = vmatprep.subr.bf16.mxu0 0
      %465 = vmatpush1.bf16.msra.mxu0 0
      %466 = vmatprep.subr.bf16.mxu0 0
      %467 = vmatpush1.bf16.msra.mxu0 0
      %468 = vmatprep.subr.bf16.mxu0 0
      %469 = vmatpush1.bf16.msra.mxu0 %v454
      %470 = vmatprep.subr.bf16.mxu0 0
      %471 = vmatpush1.bf16.msra.mxu0 %v440
      %472 = vmatprep.subr.bf16.mxu0 0
      %473 = vmatpush2.bf16.msra.mxu0 0
      %474 = vmatprep.subr.bf16.mxu0 0
      %475 = vmatpush2.bf16.msra.mxu0 0
      %476 = vmatprep.subr.bf16.mxu0 0
      %477 = vmatpush2.bf16.msra.mxu0 0
      %478 = vmatprep.subr.bf16.mxu0 0
      %479 = vmatpush2.bf16.msra.mxu0 0
      %480 = vmatprep.subr.bf16.mxu0 0
      %481 = vmatpush2.bf16.msra.mxu0 0
      %482 = vmatprep.subr.bf16.mxu0 0
      %483 = vmatpush2.bf16.msra.mxu0 0
      %484 = vmatprep.subr.bf16.mxu0 0
      %485 = vmatpush2.bf16.msra.mxu0 0
      %486 = vmatprep.subr.bf16.mxu0 0
      %487 = vmatpush2.bf16.msra.mxu0 0
      %488 = vmatprep.mubr.bf16.mxu0 0
      %489 = vmatmul.mubr.bf16.gmra.mxu0 %v445
      %v490 = vpop.f32.mrf.mxu0
      %v491 = vadd.f32 0.0, %v490
      %v492 = vpop.f32.mrf.mxu0
      %v493 = vpop.f32.mrf.mxu0
      %v494 = vadd.f32 0.0, %v493
      %v495 = vpop.f32.mrf.mxu0
      %496 = vmatprep.mubr.bf16.mxu0 0
      %497 = vmatmul.mubr.bf16.gmra.mxu0 %v448
      %v498 = vpop.f32.mrf.mxu0
      %v499 = vadd.f32 0.0, %v498
      %v500 = vpop.f32.mrf.mxu0
      %v501 = vpop.f32.mrf.mxu0
      %v502 = vpop.f32.mrf.mxu0
      %503 = vdwg.mxu0
      %v504 = vrcp.pop %v430
      %v505 = vrcp.pop %v433
      %v506 = vrcp.pop %v436
      %v507 = vmul.f32 %v491, %v504
      %v508 = vmul.f32 %v494, %v505
      %v509 = vmul.f32 %v499, %v506
      %v510 = vpack.c.bf16 %v508, %v507
      %v511 = vpack.c.bf16 %v509, %v509
      %s512 = smul.u32 %s20, 4
      %s513 = smul.addr %s512, 4
      %s514 = scalar_lea.vmem %s2, %s513
      %v515 = vld [vmem:[%s514] sm:$0xf]
      %516 = vrot.lane.b32.xlu0 %v339, 120
      %v517 = vpop.permute.xlu0 %516
      %518 = vrot.lane.b32.xlu0 %v340, 120
      %v519 = vpop.permute.xlu0 %518
      %520 = vrot.lane.b32.xlu0 %v339, 88
      %v521 = vpop.permute.xlu0 %520
      %522 = vrot.lane.b32.xlu0 %v340, 88
      %v523 = vpop.permute.xlu0 %522
      %v525 = vsel %vm347, %v517, 0
      %v528 = vsel %vm347, %v519, 0
      %v531 = vsel %vm347, %v521, 0
      %v534 = vsel %vm347, %v523, 0
      %536 = vmatprep.subr.bf16.mxu0 0
      %537 = vmatpush1.bf16.xpose.msra.mxu0 0
      %538 = vmatprep.subr.bf16.mxu0 0
      %539 = vmatpush1.bf16.xpose.msra.mxu0 0
      %540 = vmatprep.subr.bf16.mxu0 0
      %541 = vmatpush1.bf16.xpose.msra.mxu0 0
      %542 = vmatprep.subr.bf16.mxu0 0
      %543 = vmatpush1.bf16.xpose.msra.mxu0 0
      %544 = vmatprep.subr.bf16.mxu0 0
      %545 = vmatpush1.bf16.xpose.msra.mxu0 0
      %546 = vmatprep.subr.bf16.mxu0 0
      %547 = vmatpush1.bf16.xpose.msra.mxu0 0
      %548 = vmatprep.subr.bf16.mxu0 0
      %549 = vmatpush1.bf16.xpose.msra.mxu0 %v534
      %550 = vmatprep.subr.bf16.mxu0 0
      %551 = vmatpush1.bf16.xpose.msra.mxu0 %v531
      %552 = vmatprep.subr.bf16.mxu0 0
      %553 = vmatpush2.bf16.xpose.msra.mxu0 0
      %554 = vmatprep.subr.bf16.mxu0 0
      %555 = vmatpush2.bf16.xpose.msra.mxu0 0
      %556 = vmatprep.subr.bf16.mxu0 0
      %557 = vmatpush2.bf16.xpose.msra.mxu0 0
      %558 = vmatprep.subr.bf16.mxu0 0
      %559 = vmatpush2.bf16.xpose.msra.mxu0 0
      %560 = vmatprep.subr.bf16.mxu0 0
      %561 = vmatpush2.bf16.xpose.msra.mxu0 0
      %562 = vmatprep.subr.bf16.mxu0 0
      %563 = vmatpush2.bf16.xpose.msra.mxu0 0
      %564 = vmatprep.subr.bf16.mxu0 0
      %565 = vmatpush2.bf16.xpose.msra.mxu0 0
      %566 = vmatprep.subr.bf16.mxu0 0
      %567 = vmatpush2.bf16.xpose.msra.mxu0 0
      %568 = vmatprep.mubr.bf16.mxu0 0
      %569 = vmatmul.mubr.bf16.gmra.mxu0 %v525
      %v570 = vpop.f32.mrf.mxu0
      %v571 = vadd.f32 0.0, %v570
      %v572 = vpop.f32.mrf.mxu0
      %v573 = vpop.f32.mrf.mxu0
      %v574 = vadd.f32 0.0, %v573
      %v575 = vpop.f32.mrf.mxu0
      %576 = vmatprep.mubr.bf16.mxu0 0
      %577 = vmatmul.mubr.bf16.gmra.mxu0 %v528
      %v578 = vpop.f32.mrf.mxu0
      %v579 = vadd.f32 0.0, %v578
      %v580 = vpop.f32.mrf.mxu0
      %v581 = vpop.f32.mrf.mxu0
      %v582 = vpop.f32.mrf.mxu0
      %583 = vdwg.mxu0
      %v584 = vsel %vm408, %v571, -inf
      %585 = vmax.xlane.f32.xlu0 %v584
      %v586 = vpop.xlane.xlu0 %585
      %v587 = vsel %vm408, %v574, -inf
      %588 = vmax.xlane.f32.xlu0 %v587
      %v589 = vpop.xlane.xlu0 %588
      %v590 = vsel %vm415, %v579, -inf
      %591 = vmax.xlane.f32.xlu0 %v590
      %v592 = vpop.xlane.xlu0 %591
      %v593 = vsub.f32 %v571, %v586
      %v594 = vsub.f32 %v574, %v589
      %v595 = vsub.f32 %v579, %v592
      %v596 = vmul.f32 %v593, 1.442695
      %v597 = vpow.pop %v596
      %v598 = vmul.f32 %v594, 1.442695
      %v599 = vpow.pop %v598
      %v600 = vmul.f32 %v595, 1.442695
      %v601 = vpow.pop %v600
      %v602 = vsel %vm408, %v597, 0.0
      %603 = vadd.xlane.f32.xlu0 %v602
      %v604 = vpop.xlane.xlu0 %603
      %v605 = vsel %vm408, %v599, 0.0
      %606 = vadd.xlane.f32.xlu0 %v605
      %v607 = vpop.xlane.xlu0 %606
      %v608 = vsel %vm415, %v601, 0.0
      %609 = vadd.xlane.f32.xlu0 %v608
      %v610 = vpop.xlane.xlu0 %609
      %v611 = vpack.c.bf16 %v599, %v597
      %v612 = vpack.c.bf16 %v601, %v601
      %613 = vrot.lane.b32.xlu0 %v339, 56
      %v614 = vpop.permute.xlu0 %613
      %615 = vrot.lane.b32.xlu0 %v340, 56
      %v616 = vpop.permute.xlu0 %615
      %v619 = vsel %vm408, %v611, 0
      %v622 = vsel %vm408, %v612, 0
      %v625 = vand.u32 %v616, %v452
      %627 = vmatprep.subr.bf16.mxu0 0
      %628 = vmatpush1.bf16.msra.mxu0 0
      %629 = vmatprep.subr.bf16.mxu0 0
      %630 = vmatpush1.bf16.msra.mxu0 0
      %631 = vmatprep.subr.bf16.mxu0 0
      %632 = vmatpush1.bf16.msra.mxu0 0
      %633 = vmatprep.subr.bf16.mxu0 0
      %634 = vmatpush1.bf16.msra.mxu0 0
      %635 = vmatprep.subr.bf16.mxu0 0
      %636 = vmatpush1.bf16.msra.mxu0 0
      %637 = vmatprep.subr.bf16.mxu0 0
      %638 = vmatpush1.bf16.msra.mxu0 0
      %639 = vmatprep.subr.bf16.mxu0 0
      %640 = vmatpush1.bf16.msra.mxu0 %v625
      %641 = vmatprep.subr.bf16.mxu0 0
      %642 = vmatpush1.bf16.msra.mxu0 %v614
      %643 = vmatprep.subr.bf16.mxu0 0
      %644 = vmatpush2.bf16.msra.mxu0 0
      %645 = vmatprep.subr.bf16.mxu0 0
      %646 = vmatpush2.bf16.msra.mxu0 0
      %647 = vmatprep.subr.bf16.mxu0 0
      %648 = vmatpush2.bf16.msra.mxu0 0
      %649 = vmatprep.subr.bf16.mxu0 0
      %650 = vmatpush2.bf16.msra.mxu0 0
      %651 = vmatprep.subr.bf16.mxu0 0
      %652 = vmatpush2.bf16.msra.mxu0 0
      %653 = vmatprep.subr.bf16.mxu0 0
      %654 = vmatpush2.bf16.msra.mxu0 0
      %655 = vmatprep.subr.bf16.mxu0 0
      %656 = vmatpush2.bf16.msra.mxu0 0
      %657 = vmatprep.subr.bf16.mxu0 0
      %658 = vmatpush2.bf16.msra.mxu0 0
      %659 = vmatprep.mubr.bf16.mxu0 0
      %660 = vmatmul.mubr.bf16.gmra.mxu0 %v619
      %v661 = vpop.f32.mrf.mxu0
      %v662 = vadd.f32 0.0, %v661
      %v663 = vpop.f32.mrf.mxu0
      %v664 = vpop.f32.mrf.mxu0
      %v665 = vadd.f32 0.0, %v664
      %v666 = vpop.f32.mrf.mxu0
      %667 = vmatprep.mubr.bf16.mxu0 0
      %668 = vmatmul.mubr.bf16.gmra.mxu0 %v622
      %v669 = vpop.f32.mrf.mxu0
      %v670 = vadd.f32 0.0, %v669
      %v671 = vpop.f32.mrf.mxu0
      %v672 = vpop.f32.mrf.mxu0
      %v673 = vpop.f32.mrf.mxu0
      %674 = vdwg.mxu0
      %v675 = vrcp.pop %v604
      %v676 = vrcp.pop %v607
      %v677 = vrcp.pop %v610
      %v678 = vmul.f32 %v662, %v675
      %v679 = vmul.f32 %v665, %v676
      %v680 = vmul.f32 %v670, %v677
      %v681 = vpack.c.bf16 %v679, %v678
      %v682 = vpack.c.bf16 %v680, %v680
      %s683 = sadd.s32 1, %s512
      %s684 = smul.addr %s683, 4
      %s685 = scalar_lea.vmem %s2, %s684
      %v686 = vld [vmem:[%s685] sm:$0xf]
      %v688 = vsel %vm347, %v681, 0
      %v691 = vsel %vm347, %v682, 0
      %vm693 = vcmask 1043456
      %v695 = vsel %vm693, %v686, 0
      %697 = vmatprep.subr.bf16.mxu0 0
      %698 = vmatpush1.bf16.msra.mxu0 0
      %699 = vmatprep.subr.bf16.mxu0 0
      %700 = vmatpush1.bf16.msra.mxu0 0
      %701 = vmatprep.subr.bf16.mxu0 0
      %702 = vmatpush1.bf16.msra.mxu0 0
      %703 = vmatprep.subr.bf16.mxu0 0
      %704 = vmatpush1.bf16.msra.mxu0 0
      %705 = vmatprep.subr.bf16.mxu0 0
      %706 = vmatpush1.bf16.msra.mxu0 0
      %707 = vmatprep.subr.bf16.mxu0 0
      %708 = vmatpush1.bf16.msra.mxu0 0
      %709 = vmatprep.subr.bf16.mxu0 0
      %710 = vmatpush1.bf16.msra.mxu0 0
      %711 = vmatprep.subr.bf16.mxu0 0
      %712 = vmatpush1.bf16.msra.mxu0 %v695
      %713 = vmatprep.subr.bf16.mxu0 0
      %714 = vmatpush2.bf16.msra.mxu0 0
      %715 = vmatprep.subr.bf16.mxu0 0
      %716 = vmatpush2.bf16.msra.mxu0 0
      %717 = vmatprep.subr.bf16.mxu0 0
      %718 = vmatpush2.bf16.msra.mxu0 0
      %719 = vmatprep.subr.bf16.mxu0 0
      %720 = vmatpush2.bf16.msra.mxu0 0
      %721 = vmatprep.subr.bf16.mxu0 0
      %722 = vmatpush2.bf16.msra.mxu0 0
      %723 = vmatprep.subr.bf16.mxu0 0
      %724 = vmatpush2.bf16.msra.mxu0 0
      %725 = vmatprep.subr.bf16.mxu0 0
      %726 = vmatpush2.bf16.msra.mxu0 0
      %727 = vmatprep.subr.bf16.mxu0 0
      %728 = vmatpush2.bf16.msra.mxu0 0
      %729 = vmatprep.mubr.bf16.mxu0 0
      %730 = vmatmul.mubr.bf16.gmra.mxu0 %v688
      %v731 = vpop.f32.mrf.mxu0
      %v732 = vadd.f32 0.0, %v731
      %v733 = vpop.f32.mrf.mxu0
      %v734 = vpop.f32.mrf.mxu0
      %v735 = vadd.f32 0.0, %v734
      %v736 = vpop.f32.mrf.mxu0
      %737 = vmatprep.mubr.bf16.mxu0 0
      %738 = vmatmul.mubr.bf16.gmra.mxu0 %v691
      %v739 = vpop.f32.mrf.mxu0
      %v740 = vadd.f32 0.0, %v739
      %v741 = vpop.f32.mrf.mxu0
      %v742 = vpop.f32.mrf.mxu0
      %v743 = vpop.f32.mrf.mxu0
      %744 = vdwg.mxu0
      %v746 = vsel %vm347, %v510, 0
      %v749 = vsel %vm347, %v511, 0
      %v752 = vsel %vm693, %v515, 0
      %754 = vmatprep.subr.bf16.mxu0 0
      %755 = vmatpush1.bf16.msra.mxu0 0
      %756 = vmatprep.subr.bf16.mxu0 0
      %757 = vmatpush1.bf16.msra.mxu0 0
      %758 = vmatprep.subr.bf16.mxu0 0
      %759 = vmatpush1.bf16.msra.mxu0 0
      %760 = vmatprep.subr.bf16.mxu0 0
      %761 = vmatpush1.bf16.msra.mxu0 0
      %762 = vmatprep.subr.bf16.mxu0 0
      %763 = vmatpush1.bf16.msra.mxu0 0
      %764 = vmatprep.subr.bf16.mxu0 0
      %765 = vmatpush1.bf16.msra.mxu0 0
      %766 = vmatprep.subr.bf16.mxu0 0
      %767 = vmatpush1.bf16.msra.mxu0 0
      %768 = vmatprep.subr.bf16.mxu0 0
      %769 = vmatpush1.bf16.msra.mxu0 %v752
      %770 = vmatprep.subr.bf16.mxu0 0
      %771 = vmatpush2.bf16.msra.mxu0 0
      %772 = vmatprep.subr.bf16.mxu0 0
      %773 = vmatpush2.bf16.msra.mxu0 0
      %774 = vmatprep.subr.bf16.mxu0 0
      %775 = vmatpush2.bf16.msra.mxu0 0
      %776 = vmatprep.subr.bf16.mxu0 0
      %777 = vmatpush2.bf16.msra.mxu0 0
      %778 = vmatprep.subr.bf16.mxu0 0
      %779 = vmatpush2.bf16.msra.mxu0 0
      %780 = vmatprep.subr.bf16.mxu0 0
      %781 = vmatpush2.bf16.msra.mxu0 0
      %782 = vmatprep.subr.bf16.mxu0 0
      %783 = vmatpush2.bf16.msra.mxu0 0
      %784 = vmatprep.subr.bf16.mxu0 0
      %785 = vmatpush2.bf16.msra.mxu0 0
      %786 = vmatprep.mubr.bf16.mxu0 0
      %787 = vmatmul.mubr.bf16.gmra.mxu0 %v746
      %v788 = vpop.f32.mrf.mxu0
      %v789 = vadd.f32 %v732, %v788
      %v790 = vpop.f32.mrf.mxu0
      %v791 = vpop.f32.mrf.mxu0
      %v792 = vadd.f32 %v735, %v791
      %v793 = vpop.f32.mrf.mxu0
      %794 = vmatprep.mubr.bf16.mxu0 0
      %795 = vmatmul.mubr.bf16.gmra.mxu0 %v749
      %v796 = vpop.f32.mrf.mxu0
      %v797 = vadd.f32 %v740, %v796
      %v798 = vpop.f32.mrf.mxu0
      %v799 = vpop.f32.mrf.mxu0
      %v800 = vpop.f32.mrf.mxu0
      %801 = vdwg.mxu0
      %802 = vrot.lane.b32.xlu0 %v339, 112
      %v803 = vpop.permute.xlu0 %802
      %804 = vrot.lane.b32.xlu0 %v340, 112
      %v805 = vpop.permute.xlu0 %804
      %806 = vrot.lane.b32.xlu0 %v339, 80
      %v807 = vpop.permute.xlu0 %806
      %808 = vrot.lane.b32.xlu0 %v340, 80
      %v809 = vpop.permute.xlu0 %808
      %v811 = vsel %vm347, %v803, 0
      %v814 = vsel %vm347, %v805, 0
      %v817 = vsel %vm347, %v807, 0
      %v820 = vsel %vm347, %v809, 0
      %822 = vmatprep.subr.bf16.mxu0 0
      %823 = vmatpush1.bf16.xpose.msra.mxu0 0
      %824 = vmatprep.subr.bf16.mxu0 0
      %825 = vmatpush1.bf16.xpose.msra.mxu0 0
      %826 = vmatprep.subr.bf16.mxu0 0
      %827 = vmatpush1.bf16.xpose.msra.mxu0 0
      %828 = vmatprep.subr.bf16.mxu0 0
      %829 = vmatpush1.bf16.xpose.msra.mxu0 0
      %830 = vmatprep.subr.bf16.mxu0 0
      %831 = vmatpush1.bf16.xpose.msra.mxu0 0
      %832 = vmatprep.subr.bf16.mxu0 0
      %833 = vmatpush1.bf16.xpose.msra.mxu0 0
      %834 = vmatprep.subr.bf16.mxu0 0
      %835 = vmatpush1.bf16.xpose.msra.mxu0 %v820
      %836 = vmatprep.subr.bf16.mxu0 0
      %837 = vmatpush1.bf16.xpose.msra.mxu0 %v817
      %838 = vmatprep.subr.bf16.mxu0 0
      %839 = vmatpush2.bf16.xpose.msra.mxu0 0
      %840 = vmatprep.subr.bf16.mxu0 0
      %841 = vmatpush2.bf16.xpose.msra.mxu0 0
      %842 = vmatprep.subr.bf16.mxu0 0
      %843 = vmatpush2.bf16.xpose.msra.mxu0 0
      %844 = vmatprep.subr.bf16.mxu0 0
      %845 = vmatpush2.bf16.xpose.msra.mxu0 0
      %846 = vmatprep.subr.bf16.mxu0 0
      %847 = vmatpush2.bf16.xpose.msra.mxu0 0
      %848 = vmatprep.subr.bf16.mxu0 0
      %849 = vmatpush2.bf16.xpose.msra.mxu0 0
      %850 = vmatprep.subr.bf16.mxu0 0
      %851 = vmatpush2.bf16.xpose.msra.mxu0 0
      %852 = vmatprep.subr.bf16.mxu0 0
      %853 = vmatpush2.bf16.xpose.msra.mxu0 0
      %854 = vmatprep.mubr.bf16.mxu0 0
      %855 = vmatmul.mubr.bf16.gmra.mxu0 %v811
      %v856 = vpop.f32.mrf.mxu0
      %v857 = vadd.f32 0.0, %v856
      %v858 = vpop.f32.mrf.mxu0
      %v859 = vpop.f32.mrf.mxu0
      %v860 = vadd.f32 0.0, %v859
      %v861 = vpop.f32.mrf.mxu0
      %862 = vmatprep.mubr.bf16.mxu0 0
      %863 = vmatmul.mubr.bf16.gmra.mxu0 %v814
      %v864 = vpop.f32.mrf.mxu0
      %v865 = vadd.f32 0.0, %v864
      %v866 = vpop.f32.mrf.mxu0
      %v867 = vpop.f32.mrf.mxu0
      %v868 = vpop.f32.mrf.mxu0
      %869 = vdwg.mxu0
      %v870 = vsel %vm408, %v857, -inf
      %871 = vmax.xlane.f32.xlu0 %v870
      %v872 = vpop.xlane.xlu0 %871
      %v873 = vsel %vm408, %v860, -inf
      %874 = vmax.xlane.f32.xlu0 %v873
      %v875 = vpop.xlane.xlu0 %874
      %v876 = vsel %vm415, %v865, -inf
      %877 = vmax.xlane.f32.xlu0 %v876
      %v878 = vpop.xlane.xlu0 %877
      %v879 = vsub.f32 %v857, %v872
      %v880 = vsub.f32 %v860, %v875
      %v881 = vsub.f32 %v865, %v878
      %v882 = vmul.f32 %v879, 1.442695
      %v883 = vpow.pop %v882
      %v884 = vmul.f32 %v880, 1.442695
      %v885 = vpow.pop %v884
      %v886 = vmul.f32 %v881, 1.442695
      %v887 = vpow.pop %v886
      %v888 = vsel %vm408, %v883, 0.0
      %889 = vadd.xlane.f32.xlu0 %v888
      %v890 = vpop.xlane.xlu0 %889
      %v891 = vsel %vm408, %v885, 0.0
      %892 = vadd.xlane.f32.xlu0 %v891
      %v893 = vpop.xlane.xlu0 %892
      %v894 = vsel %vm415, %v887, 0.0
      %895 = vadd.xlane.f32.xlu0 %v894
      %v896 = vpop.xlane.xlu0 %895
      %v897 = vpack.c.bf16 %v885, %v883
      %v898 = vpack.c.bf16 %v887, %v887
      %899 = vrot.lane.b32.xlu0 %v339, 48
      %v900 = vpop.permute.xlu0 %899
      %901 = vrot.lane.b32.xlu0 %v340, 48
      %v902 = vpop.permute.xlu0 %901
      %v905 = vsel %vm408, %v897, 0
      %v908 = vsel %vm408, %v898, 0
      %v911 = vand.u32 %v902, %v452
      %913 = vmatprep.subr.bf16.mxu0 0
      %914 = vmatpush1.bf16.msra.mxu0 0
      %915 = vmatprep.subr.bf16.mxu0 0
      %916 = vmatpush1.bf16.msra.mxu0 0
      %917 = vmatprep.subr.bf16.mxu0 0
      %918 = vmatpush1.bf16.msra.mxu0 0
      %919 = vmatprep.subr.bf16.mxu0 0
      %920 = vmatpush1.bf16.msra.mxu0 0
      %921 = vmatprep.subr.bf16.mxu0 0
      %922 = vmatpush1.bf16.msra.mxu0 0
      %923 = vmatprep.subr.bf16.mxu0 0
      %924 = vmatpush1.bf16.msra.mxu0 0
      %925 = vmatprep.subr.bf16.mxu0 0
      %926 = vmatpush1.bf16.msra.mxu0 %v911
      %927 = vmatprep.subr.bf16.mxu0 0
      %928 = vmatpush1.bf16.msra.mxu0 %v900
      %929 = vmatprep.subr.bf16.mxu0 0
      %930 = vmatpush2.bf16.msra.mxu0 0
      %931 = vmatprep.subr.bf16.mxu0 0
      %932 = vmatpush2.bf16.msra.mxu0 0
      %933 = vmatprep.subr.bf16.mxu0 0
      %934 = vmatpush2.bf16.msra.mxu0 0
      %935 = vmatprep.subr.bf16.mxu0 0
      %936 = vmatpush2.bf16.msra.mxu0 0
      %937 = vmatprep.subr.bf16.mxu0 0
      %938 = vmatpush2.bf16.msra.mxu0 0
      %939 = vmatprep.subr.bf16.mxu0 0
      %940 = vmatpush2.bf16.msra.mxu0 0
      %941 = vmatprep.subr.bf16.mxu0 0
      %942 = vmatpush2.bf16.msra.mxu0 0
      %943 = vmatprep.subr.bf16.mxu0 0
      %944 = vmatpush2.bf16.msra.mxu0 0
      %945 = vmatprep.mubr.bf16.mxu0 0
      %946 = vmatmul.mubr.bf16.gmra.mxu0 %v905
      %v947 = vpop.f32.mrf.mxu0
      %v948 = vadd.f32 0.0, %v947
      %v949 = vpop.f32.mrf.mxu0
      %v950 = vpop.f32.mrf.mxu0
      %v951 = vadd.f32 0.0, %v950
      %v952 = vpop.f32.mrf.mxu0
      %953 = vmatprep.mubr.bf16.mxu0 0
      %954 = vmatmul.mubr.bf16.gmra.mxu0 %v908
      %v955 = vpop.f32.mrf.mxu0
      %v956 = vadd.f32 0.0, %v955
      %v957 = vpop.f32.mrf.mxu0
      %v958 = vpop.f32.mrf.mxu0
      %v959 = vpop.f32.mrf.mxu0
      %960 = vdwg.mxu0
      %v961 = vrcp.pop %v890
      %v962 = vrcp.pop %v893
      %v963 = vrcp.pop %v896
      %v964 = vmul.f32 %v948, %v961
      %v965 = vmul.f32 %v951, %v962
      %v966 = vmul.f32 %v956, %v963
      %v967 = vpack.c.bf16 %v965, %v964
      %v968 = vpack.c.bf16 %v966, %v966
      %s969 = sadd.s32 2, %s512
      %s970 = smul.addr %s969, 4
      %s971 = scalar_lea.vmem %s2, %s970
      %v972 = vld [vmem:[%s971] sm:$0xf]
      %v974 = vsel %vm347, %v967, 0
      %v977 = vsel %vm347, %v968, 0
      %v980 = vsel %vm693, %v972, 0
      %982 = vmatprep.subr.bf16.mxu0 0
      %983 = vmatpush1.bf16.msra.mxu0 0
      %984 = vmatprep.subr.bf16.mxu0 0
      %985 = vmatpush1.bf16.msra.mxu0 0
      %986 = vmatprep.subr.bf16.mxu0 0
      %987 = vmatpush1.bf16.msra.mxu0 0
      %988 = vmatprep.subr.bf16.mxu0 0
      %989 = vmatpush1.bf16.msra.mxu0 0
      %990 = vmatprep.subr.bf16.mxu0 0
      %991 = vmatpush1.bf16.msra.mxu0 0
      %992 = vmatprep.subr.bf16.mxu0 0
      %993 = vmatpush1.bf16.msra.mxu0 0
      %994 = vmatprep.subr.bf16.mxu0 0
      %995 = vmatpush1.bf16.msra.mxu0 0
      %996 = vmatprep.subr.bf16.mxu0 0
      %997 = vmatpush1.bf16.msra.mxu0 %v980
      %998 = vmatprep.subr.bf16.mxu0 0
      %999 = vmatpush2.bf16.msra.mxu0 0
      %1000 = vmatprep.subr.bf16.mxu0 0
      %1001 = vmatpush2.bf16.msra.mxu0 0
      %1002 = vmatprep.subr.bf16.mxu0 0
      %1003 = vmatpush2.bf16.msra.mxu0 0
      %1004 = vmatprep.subr.bf16.mxu0 0
      %1005 = vmatpush2.bf16.msra.mxu0 0
      %1006 = vmatprep.subr.bf16.mxu0 0
      %1007 = vmatpush2.bf16.msra.mxu0 0
      %1008 = vmatprep.subr.bf16.mxu0 0
      %1009 = vmatpush2.bf16.msra.mxu0 0
      %1010 = vmatprep.subr.bf16.mxu0 0
      %1011 = vmatpush2.bf16.msra.mxu0 0
      %1012 = vmatprep.subr.bf16.mxu0 0
      %1013 = vmatpush2.bf16.msra.mxu0 0
      %1014 = vmatprep.mubr.bf16.mxu0 0
      %1015 = vmatmul.mubr.bf16.gmra.mxu0 %v974
      %v1016 = vpop.f32.mrf.mxu0
      %v1017 = vadd.f32 0.0, %v1016
      %v1018 = vpop.f32.mrf.mxu0
      %v1019 = vpop.f32.mrf.mxu0
      %v1020 = vadd.f32 0.0, %v1019
      %v1021 = vpop.f32.mrf.mxu0
      %1022 = vmatprep.mubr.bf16.mxu0 0
      %1023 = vmatmul.mubr.bf16.gmra.mxu0 %v977
      %v1024 = vpop.f32.mrf.mxu0
      %v1025 = vadd.f32 0.0, %v1024
      %v1026 = vpop.f32.mrf.mxu0
      %v1027 = vpop.f32.mrf.mxu0
      %v1028 = vpop.f32.mrf.mxu0
      %1029 = vdwg.mxu0
      %v1030 = vadd.f32 %v789, %v1017
      %v1031 = vadd.f32 %v792, %v1020
      %v1032 = vadd.f32 %v797, %v1025
      %1033 = vrot.lane.b32.xlu0 %v339, 104
      %v1034 = vpop.permute.xlu0 %1033
      %1035 = vrot.lane.b32.xlu0 %v340, 104
      %v1036 = vpop.permute.xlu0 %1035
      %1037 = vrot.lane.b32.xlu0 %v339, 72
      %v1038 = vpop.permute.xlu0 %1037
      %1039 = vrot.lane.b32.xlu0 %v340, 72
      %v1040 = vpop.permute.xlu0 %1039
      %v1042 = vsel %vm347, %v1034, 0
      %v1045 = vsel %vm347, %v1036, 0
      %v1048 = vsel %vm347, %v1038, 0
      %v1051 = vsel %vm347, %v1040, 0
      %1053 = vmatprep.subr.bf16.mxu0 0
      %1054 = vmatpush1.bf16.xpose.msra.mxu0 0
      %1055 = vmatprep.subr.bf16.mxu0 0
      %1056 = vmatpush1.bf16.xpose.msra.mxu0 0
      %1057 = vmatprep.subr.bf16.mxu0 0
      %1058 = vmatpush1.bf16.xpose.msra.mxu0 0
      %1059 = vmatprep.subr.bf16.mxu0 0
      %1060 = vmatpush1.bf16.xpose.msra.mxu0 0
      %1061 = vmatprep.subr.bf16.mxu0 0
      %1062 = vmatpush1.bf16.xpose.msra.mxu0 0
      %1063 = vmatprep.subr.bf16.mxu0 0
      %1064 = vmatpush1.bf16.xpose.msra.mxu0 0
      %1065 = vmatprep.subr.bf16.mxu0 0
      %1066 = vmatpush1.bf16.xpose.msra.mxu0 %v1051
      %1067 = vmatprep.subr.bf16.mxu0 0
      %1068 = vmatpush1.bf16.xpose.msra.mxu0 %v1048
      %1069 = vmatprep.subr.bf16.mxu0 0
      %1070 = vmatpush2.bf16.xpose.msra.mxu0 0
      %1071 = vmatprep.subr.bf16.mxu0 0
      %1072 = vmatpush2.bf16.xpose.msra.mxu0 0
      %1073 = vmatprep.subr.bf16.mxu0 0
      %1074 = vmatpush2.bf16.xpose.msra.mxu0 0
      %1075 = vmatprep.subr.bf16.mxu0 0
      %1076 = vmatpush2.bf16.xpose.msra.mxu0 0
      %1077 = vmatprep.subr.bf16.mxu0 0
      %1078 = vmatpush2.bf16.xpose.msra.mxu0 0
      %1079 = vmatprep.subr.bf16.mxu0 0
      %1080 = vmatpush2.bf16.xpose.msra.mxu0 0
      %1081 = vmatprep.subr.bf16.mxu0 0
      %1082 = vmatpush2.bf16.xpose.msra.mxu0 0
      %1083 = vmatprep.subr.bf16.mxu0 0
      %1084 = vmatpush2.bf16.xpose.msra.mxu0 0
      %1085 = vmatprep.mubr.bf16.mxu0 0
      %1086 = vmatmul.mubr.bf16.gmra.mxu0 %v1042
      %v1087 = vpop.f32.mrf.mxu0
      %v1088 = vadd.f32 0.0, %v1087
      %v1089 = vpop.f32.mrf.mxu0
      %v1090 = vpop.f32.mrf.mxu0
      %v1091 = vadd.f32 0.0, %v1090
      %v1092 = vpop.f32.mrf.mxu0
      %1093 = vmatprep.mubr.bf16.mxu0 0
      %1094 = vmatmul.mubr.bf16.gmra.mxu0 %v1045
      %v1095 = vpop.f32.mrf.mxu0
      %v1096 = vadd.f32 0.0, %v1095
      %v1097 = vpop.f32.mrf.mxu0
      %v1098 = vpop.f32.mrf.mxu0
      %v1099 = vpop.f32.mrf.mxu0
      %1100 = vdwg.mxu0
      %v1101 = vsel %vm408, %v1088, -inf
      %1102 = vmax.xlane.f32.xlu0 %v1101
      %v1103 = vpop.xlane.xlu0 %1102
      %v1104 = vsel %vm408, %v1091, -inf
      %1105 = vmax.xlane.f32.xlu0 %v1104
      %v1106 = vpop.xlane.xlu0 %1105
      %v1107 = vsel %vm415, %v1096, -inf
      %1108 = vmax.xlane.f32.xlu0 %v1107
      %v1109 = vpop.xlane.xlu0 %1108
      %v1110 = vsub.f32 %v1088, %v1103
      %v1111 = vsub.f32 %v1091, %v1106
      %v1112 = vsub.f32 %v1096, %v1109
      %v1113 = vmul.f32 %v1110, 1.442695
      %v1114 = vpow.pop %v1113
      %v1115 = vmul.f32 %v1111, 1.442695
      %v1116 = vpow.pop %v1115
      %v1117 = vmul.f32 %v1112, 1.442695
      %v1118 = vpow.pop %v1117
      %v1119 = vsel %vm408, %v1114, 0.0
      %1120 = vadd.xlane.f32.xlu0 %v1119
      %v1121 = vpop.xlane.xlu0 %1120
      %v1122 = vsel %vm408, %v1116, 0.0
      %1123 = vadd.xlane.f32.xlu0 %v1122
      %v1124 = vpop.xlane.xlu0 %1123
      %v1125 = vsel %vm415, %v1118, 0.0
      %1126 = vadd.xlane.f32.xlu0 %v1125
      %v1127 = vpop.xlane.xlu0 %1126
      %v1128 = vpack.c.bf16 %v1116, %v1114
      %v1129 = vpack.c.bf16 %v1118, %v1118
      %1130 = vrot.lane.b32.xlu0 %v339, 40
      %v1131 = vpop.permute.xlu0 %1130
      %1132 = vrot.lane.b32.xlu0 %v340, 40
      %v1133 = vpop.permute.xlu0 %1132
      %v1136 = vsel %vm408, %v1128, 0
      %v1139 = vsel %vm408, %v1129, 0
      %v1142 = vand.u32 %v1133, %v452
      %1144 = vmatprep.subr.bf16.mxu0 0
      %1145 = vmatpush1.bf16.msra.mxu0 0
      %1146 = vmatprep.subr.bf16.mxu0 0
      %1147 = vmatpush1.bf16.msra.mxu0 0
      %1148 = vmatprep.subr.bf16.mxu0 0
      %1149 = vmatpush1.bf16.msra.mxu0 0
      %1150 = vmatprep.subr.bf16.mxu0 0
      %1151 = vmatpush1.bf16.msra.mxu0 0
      %1152 = vmatprep.subr.bf16.mxu0 0
      %1153 = vmatpush1.bf16.msra.mxu0 0
      %1154 = vmatprep.subr.bf16.mxu0 0
      %1155 = vmatpush1.bf16.msra.mxu0 0
      %1156 = vmatprep.subr.bf16.mxu0 0
      %1157 = vmatpush1.bf16.msra.mxu0 %v1142
      %1158 = vmatprep.subr.bf16.mxu0 0
      %1159 = vmatpush1.bf16.msra.mxu0 %v1131
      %1160 = vmatprep.subr.bf16.mxu0 0
      %1161 = vmatpush2.bf16.msra.mxu0 0
      %1162 = vmatprep.subr.bf16.mxu0 0
      %1163 = vmatpush2.bf16.msra.mxu0 0
      %1164 = vmatprep.subr.bf16.mxu0 0
      %1165 = vmatpush2.bf16.msra.mxu0 0
      %1166 = vmatprep.subr.bf16.mxu0 0
      %1167 = vmatpush2.bf16.msra.mxu0 0
      %1168 = vmatprep.subr.bf16.mxu0 0
      %1169 = vmatpush2.bf16.msra.mxu0 0
      %1170 = vmatprep.subr.bf16.mxu0 0
      %1171 = vmatpush2.bf16.msra.mxu0 0
      %1172 = vmatprep.subr.bf16.mxu0 0
      %1173 = vmatpush2.bf16.msra.mxu0 0
      %1174 = vmatprep.subr.bf16.mxu0 0
      %1175 = vmatpush2.bf16.msra.mxu0 0
      %1176 = vmatprep.mubr.bf16.mxu0 0
      %1177 = vmatmul.mubr.bf16.gmra.mxu0 %v1136
      %v1178 = vpop.f32.mrf.mxu0
      %v1179 = vadd.f32 0.0, %v1178
      %v1180 = vpop.f32.mrf.mxu0
      %v1181 = vpop.f32.mrf.mxu0
      %v1182 = vadd.f32 0.0, %v1181
      %v1183 = vpop.f32.mrf.mxu0
      %1184 = vmatprep.mubr.bf16.mxu0 0
      %1185 = vmatmul.mubr.bf16.gmra.mxu0 %v1139
      %v1186 = vpop.f32.mrf.mxu0
      %v1187 = vadd.f32 0.0, %v1186
      %v1188 = vpop.f32.mrf.mxu0
      %v1189 = vpop.f32.mrf.mxu0
      %v1190 = vpop.f32.mrf.mxu0
      %1191 = vdwg.mxu0
      %v1192 = vrcp.pop %v1121
      %v1193 = vrcp.pop %v1124
      %v1194 = vrcp.pop %v1127
      %v1195 = vmul.f32 %v1179, %v1192
      %v1196 = vmul.f32 %v1182, %v1193
      %v1197 = vmul.f32 %v1187, %v1194
      %v1198 = vpack.c.bf16 %v1196, %v1195
      %v1199 = vpack.c.bf16 %v1197, %v1197
      %s1200 = sadd.s32 3, %s512
      %s1201 = smul.addr %s1200, 4
      %s1202 = scalar_lea.vmem %s2, %s1201
      %v1203 = vld [vmem:[%s1202] sm:$0xf]
      %v1205 = vsel %vm347, %v1198, 0
      %v1208 = vsel %vm347, %v1199, 0
      %v1211 = vsel %vm693, %v1203, 0
      %1213 = vmatprep.subr.bf16.mxu0 0
      %1214 = vmatpush1.bf16.msra.mxu0 0
      %1215 = vmatprep.subr.bf16.mxu0 0
      %1216 = vmatpush1.bf16.msra.mxu0 0
      %1217 = vmatprep.subr.bf16.mxu0 0
      %1218 = vmatpush1.bf16.msra.mxu0 0
      %1219 = vmatprep.subr.bf16.mxu0 0
      %1220 = vmatpush1.bf16.msra.mxu0 0
      %1221 = vmatprep.subr.bf16.mxu0 0
      %1222 = vmatpush1.bf16.msra.mxu0 0
      %1223 = vmatprep.subr.bf16.mxu0 0
      %1224 = vmatpush1.bf16.msra.mxu0 0
      %1225 = vmatprep.subr.bf16.mxu0 0
      %1226 = vmatpush1.bf16.msra.mxu0 0
      %1227 = vmatprep.subr.bf16.mxu0 0
      %1228 = vmatpush1.bf16.msra.mxu0 %v1211
      %1229 = vmatprep.subr.bf16.mxu0 0
      %1230 = vmatpush2.bf16.msra.mxu0 0
      %1231 = vmatprep.subr.bf16.mxu0 0
      %1232 = vmatpush2.bf16.msra.mxu0 0
      %1233 = vmatprep.subr.bf16.mxu0 0
      %1234 = vmatpush2.bf16.msra.mxu0 0
      %1235 = vmatprep.subr.bf16.mxu0 0
      %1236 = vmatpush2.bf16.msra.mxu0 0
      %1237 = vmatprep.subr.bf16.mxu0 0
      %1238 = vmatpush2.bf16.msra.mxu0 0
      %1239 = vmatprep.subr.bf16.mxu0 0
      %1240 = vmatpush2.bf16.msra.mxu0 0
      %1241 = vmatprep.subr.bf16.mxu0 0
      %1242 = vmatpush2.bf16.msra.mxu0 0
      %1243 = vmatprep.subr.bf16.mxu0 0
      %1244 = vmatpush2.bf16.msra.mxu0 0
      %1245 = vmatprep.mubr.bf16.mxu0 0
      %1246 = vmatmul.mubr.bf16.gmra.mxu0 %v1205
      %v1247 = vpop.f32.mrf.mxu0
      %v1248 = vadd.f32 0.0, %v1247
      %v1249 = vpop.f32.mrf.mxu0
      %v1250 = vpop.f32.mrf.mxu0
      %v1251 = vadd.f32 0.0, %v1250
      %v1252 = vpop.f32.mrf.mxu0
      %1253 = vmatprep.mubr.bf16.mxu0 0
      %1254 = vmatmul.mubr.bf16.gmra.mxu0 %v1208
      %v1255 = vpop.f32.mrf.mxu0
      %v1256 = vadd.f32 0.0, %v1255
      %v1257 = vpop.f32.mrf.mxu0
      %v1258 = vpop.f32.mrf.mxu0
      %v1259 = vpop.f32.mrf.mxu0
      %1260 = vdwg.mxu0
      %v1261 = vadd.f32 %v1030, %v1248
      %v1262 = vadd.f32 %v1031, %v1251
      %v1263 = vadd.f32 %v1032, %v1256
      %p1264 = scmp.eq.s32.totalorder %s20, 0
      // Predicated region
      $region37: #{tpu_custom_call.1} parent=35 // pred_check
        %p1265 = pneg %p1264
      $region38: #{tpu_custom_call.1} parent=35 // pred_check_branch
        %1267 = sbr.rel (%p1265) target = $region40
      $region39: #{tpu_custom_call.1} parent=35 // pred_region
        %v1268 = vld [vmem:[%s3] sm:$0x1]
        %v1270 = vlaneseq
        %v1271 = vshrl.u32 %v1270, 7
        %v1272 = vsub.s32 0, %v1271
        %v1273 = vrot.slane %v1268, %v1272
        %v1275 = vadd.f32 %v1261, %v1273
        %v1276 = vadd.f32 %v1262, %v1273
        %v1277 = vadd.f32 %v1263, %v1273
        %1278 = vst [vmem:[%s209] sm:$0xff] %v1275
        %1279 = vst [vmem:[%s209 + $0x8] sm:$0xff] %v1276
        %1280 = vst [vmem:[%s209 + $0x10] sm:$0x1] %v1277
      $region40: #{tpu_custom_call.1} parent=35 // pred_fallthru
        _
      %p1281 = scmp.gt.s32.totalorder %s20, 0
      // Predicated region
      $region41: #{tpu_custom_call.1} parent=35 // pred_check
        %p1282 = pneg %p1281
      $region42: #{tpu_custom_call.1} parent=35 // pred_check_branch
        %1284 = sbr.rel (%p1282) target = $region44
      $region43: #{tpu_custom_call.1} parent=35 // pred_region
        %v1285 = vld [vmem:[%s209] sm:$0xff]
        %v1286 = vld [vmem:[%s209 + $0x8] sm:$0xff]
        %v1287 = vld [vmem:[%s209 + $0x10] sm:$0x1]
        %v1288 = vadd.f32 %v1285, %v1261
        %v1289 = vadd.f32 %v1286, %v1262
        %v1290 = vadd.f32 %v1287, %v1263
        %1291 = vst [vmem:[%s209] sm:$0xff] %v1288
        %1292 = vst [vmem:[%s209 + $0x8] sm:$0xff] %v1289
        %1293 = vst [vmem:[%s209 + $0x10] sm:$0x1] %v1290
      $region44: #{tpu_custom_call.1} parent=35 // pred_fallthru
        _
      %p1294 = scmp.lt.s32.totalorder %s19, 1
      %s1295 = scalar_select %p1294, %s19, 1
      %s1296 = smul.addr %s1295, 3
      %s1297 = smul.addr %s1296, 8
      %s1298 = scalar_lea.vmem %s4, %s1297
      // Predicated region
      $region45: #{tpu_custom_call.1} parent=35 // pred_check
        %p1299 = pneg %p134
      $region46: #{tpu_custom_call.1} parent=35 // pred_check_branch
        %1301 = sbr.rel (%p1299) target = $region48
      $region47: #{tpu_custom_call.1} parent=35 // pred_region
        _
      $region48: #{tpu_custom_call.1} parent=35 // pred_fallthru
        _
    $region36: #{tpu_custom_call.1} parent=5 // pred_fallthru
      _
    %p1302 = scmp.le.s32.totalorder 2, %s10
    // Predicated region
    $region49: #{tpu_custom_call.1} parent=5 // pred_check
      %p1303 = pneg %p1302
    $region50: #{tpu_custom_call.1} parent=5 // pred_check_branch
      %1305 = sbr.rel (%p1303) target = $region52
    $region51: #{tpu_custom_call.1} parent=5 // pred_region
      %s1306 = ssub.s32 %s10, 2
      // Predicated region
      $region53: #{tpu_custom_call.1} parent=51 // pred_check
        %p1307 = pneg %p140
      $region54: #{tpu_custom_call.1} parent=51 // pred_check_branch
        %1309 = sbr.rel (%p1307) target = $region56
      $region55: #{tpu_custom_call.1} parent=51 // pred_region
        %p1310 = scmp.lt.s32.totalorder %s21, 1
        %s1311 = scalar_select %p1310, %s21, 1
        %s1312 = smul.addr %s1311, 3
        %s1313 = smul.addr %s1312, 8
        %s1314 = scalar_lea.vmem %s4, %s1313
      $region56: #{tpu_custom_call.1} parent=51 // pred_fallthru
        _
    $region52: #{tpu_custom_call.1} parent=5 // pred_fallthru
      _
  $region6: #{tpu_custom_call.1} parent=0 // loop_footer
    %s14 = sadd.s32 1, %s10
  $region7: #{tpu_custom_call.1} parent=0 // loop_footer_branch
    %9 = sbr.rel target = $region3
  $region8: #{tpu_custom_call.1} parent=0 // loop_exit
    _

</llo_original>
